<compile_context>
chip_gen: v6e
topology: v6e:2x2x1
jax: 0.10.0
libtpu: 0.0.40
codegen_flags: <defaults>
</compile_context>

<pallas_src>
import functools

import jax
import jax.numpy as jnp
from jax.experimental import pallas as pl
from jax.experimental.pallas import tpu as pltpu


def _round_up(n, m):
    return ((n + m - 1) // m) * m


def _cdiv(a, b):
    return (a + b - 1) // b


def _adapter_kernel(x_ref, res_ref, gamma_ref, beta_ref,
                    wd_ref, bd_ref, wu_ref, bu_ref,
                    out_ref, down_ref, up_ref, *, eps):
    """One (tm, D) row tile: out = ReLU(LN(x) @ Wd + bd) @ Wu + bu + residual."""
    x = x_ref[...].astype(jnp.float32)

    # LayerNorm (nn.LayerNorm default eps=1e-5), f32 math (required on v5e: no bf16 VPU).
    mean = jnp.mean(x, axis=-1, keepdims=True)
    xc = x - mean
    var = jnp.mean(xc * xc, axis=-1, keepdims=True)
    ln = xc * jax.lax.rsqrt(var + eps)
    ln = ln * gamma_ref[...].astype(jnp.float32) + beta_ref[...].astype(jnp.float32)

    # MXU matmuls run at the native weight dtype; f32 accumulation kept via
    # preferred_element_type.
    down = jnp.dot(ln.astype(wd_ref.dtype), wd_ref[...],
                   preferred_element_type=jnp.float32)
    down = jnp.maximum(down + bd_ref[...].astype(jnp.float32), 0.0)   # ReLU

    up = jnp.dot(down.astype(wu_ref.dtype), wu_ref[...],
                 preferred_element_type=jnp.float32)
    up = up + bu_ref[...].astype(jnp.float32)

    out = up + res_ref[...].astype(jnp.float32)        # residual_before_ln=True

    out_ref[...] = out.astype(out_ref.dtype)
    down_ref[...] = down.astype(down_ref.dtype)
    up_ref[...] = up.astype(up_ref.dtype)


def _vmem_footprint_bytes(tm, d, dd_p, act_itemsize, w_itemsize, weight_bufs):
    """Approximate VMEM use of one pipeline stage configuration."""
    act_in = 2 * (2 * tm * d) * act_itemsize                    # x, res (double-buffered)
    act_out = 2 * (2 * tm * d + tm * dd_p) * act_itemsize       # out, up, down (double-buffered)
    weights = weight_bufs * (2 * d * dd_p + 2 * d + dd_p + d) * w_itemsize
    temps = (2 * tm * d + tm * dd_p) * 4                        # f32 intermediates
    return act_in + act_out + weights + temps


def adapter_pallas(x, residual, gamma, beta, w_down, b_down, w_up, b_up,
                   *, tile_rows=512, eps=1e-5,
                   out_dtype=None, down_dtype=None, up_dtype=None,
                   matmul_dtype=None, single_buffer_weights=True):
    """x, residual: (..., D); gamma/beta: (D,); w_down: (D, Dd); w_up: (Dd, D).

    Returns (out, down, up) matching the PyTorch module's forward.
    `down_dtype`/`up_dtype`/`out_dtype` can be set to bf16 to cut output HBM traffic;
    `matmul_dtype=jnp.bfloat16` pre-casts the weights for native-bf16 MXU passes.
    """
    orig_shape = x.shape
    d = orig_shape[-1]
    dd = w_down.shape[1]
    lead = orig_shape[:-1]

    out_dtype = out_dtype or x.dtype
    down_dtype = down_dtype or x.dtype
    up_dtype = up_dtype or x.dtype

    x2 = x.reshape(-1, d)
    r2 = residual.reshape(-1, d)
    rows = x2.shape[0]

    # Lane-dense `down` store: pad the hidden dim to a multiple of 128 so the
    # (tm, Dd) store is an unmasked full-lane vst.  Extra columns are exactly zero
    # (zero weight columns + zero bias -> ReLU(0) = 0) and the padded W_up rows are
    # zero, so the math is bit-identical for the valid columns.
    if dd % 128 != 0:
        dd_p = _round_up(dd, 128)
        w_down = jnp.pad(w_down, ((0, 0), (0, dd_p - dd)))
        b_down = jnp.pad(b_down, ((0, dd_p - dd),))
        w_up = jnp.pad(w_up, ((0, dd_p - dd), (0, 0)))
    else:
        dd_p = dd

    if matmul_dtype is not None:
        w_down = w_down.astype(matmul_dtype)
        w_up = w_up.astype(matmul_dtype)

    gamma2 = gamma.reshape(1, d)
    beta2 = beta.reshape(1, d)
    bd2 = b_down.reshape(1, dd_p)
    bu2 = b_up.reshape(1, d)

    act_itemsize = jnp.dtype(x.dtype).itemsize
    w_itemsize = jnp.dtype(w_down.dtype).itemsize
    weight_bufs = 1 if single_buffer_weights else 2

    # Row-tile selection: as large as fits a conservative VMEM budget (portable to
    # v7x's 64 MiB physical VMEM), sublane-aligned (16 for sub-32-bit activations),
    # and with >= 2 grid steps so the "parallel" axis shards across both v7x TCs.
    row_align = 16 if act_itemsize < 4 else 8
    tm = _round_up(min(tile_rows, _round_up(rows, row_align)), row_align)
    if rows > row_align and _cdiv(rows, tm) < 2:
        tm = _round_up(_cdiv(rows, 2), row_align)
    VMEM_BUDGET = 40 * 1024 * 1024
    while tm > 4 * row_align and _vmem_footprint_bytes(
            tm, d, dd_p, act_itemsize, w_itemsize, weight_bufs) > VMEM_BUDGET:
        tm = _round_up(tm // 2, row_align)

    # Ragged last block: LN / matmuls are row-independent, so the garbage rows in
    # the padded last tile never contaminate valid rows and their writes are masked.
    grid = (_cdiv(rows, tm),)

    foot = _vmem_footprint_bytes(tm, d, dd_p, act_itemsize, w_itemsize, weight_bufs)
    # Never go below the default scoped limit; leave headroom for Mosaic scratch.
    vmem_limit_bytes = int(min(max(2 * foot + (4 << 20), 32 << 20), 48 << 20))

    cost = pl.CostEstimate(
        flops=4 * rows * d * dd_p + 10 * rows * d,
        transcendentals=rows,  # rsqrt per row
        bytes_accessed=(2 * rows * d * act_itemsize
                        + (2 * d * dd_p + 2 * d + dd_p + d) * w_itemsize
                        + 2 * rows * d * jnp.dtype(out_dtype).itemsize
                        + rows * dd_p * jnp.dtype(down_dtype).itemsize),
    )

    def _row_spec(cols):
        return pl.BlockSpec((tm, cols), lambda i: (i, 0))

    def _const_spec(shape, single_buffer):
        index_map = lambda i: (0, 0)
        if single_buffer and hasattr(pl, "Buffered"):
            # Constant index map -> no refetch across grid steps; one buffer suffices.
            return pl.BlockSpec(shape, index_map, pipeline_mode=pl.Buffered(1))
        return pl.BlockSpec(shape, index_map)

    def _run(single_buffer):
        call = pl.pallas_call(
            functools.partial(_adapter_kernel, eps=eps),
            out_shape=(
                jax.ShapeDtypeStruct((rows, d), out_dtype),
                jax.ShapeDtypeStruct((rows, dd_p), down_dtype),
                jax.ShapeDtypeStruct((rows, d), up_dtype),
            ),
            grid_spec=pltpu.PrefetchScalarGridSpec(
                num_scalar_prefetch=0,
                grid=grid,
                in_specs=[
                    _row_spec(d),                            # x row tile
                    _row_spec(d),                            # residual row tile
                    _const_spec((1, d), single_buffer),      # LN gamma
                    _const_spec((1, d), single_buffer),      # LN beta
                    _const_spec((d, dd_p), single_buffer),   # W_down (resident)
                    _const_spec((1, dd_p), single_buffer),   # b_down
                    _const_spec((dd_p, d), single_buffer),   # W_up (resident)
                    _const_spec((1, d), single_buffer),      # b_up
                ],
                out_specs=[
                    _row_spec(d),      # output
                    _row_spec(dd_p),   # down (lane-dense)
                    _row_spec(d),      # up
                ],
            ),
            compiler_params=pltpu.CompilerParams(
                dimension_semantics=("parallel",),
                vmem_limit_bytes=vmem_limit_bytes,
            ),
            cost_estimate=cost,
        )
        return call(x2, r2, gamma2, beta2, w_down, bd2, w_up, bu2)

    if single_buffer_weights:
        try:
            out2, down2, up2 = _run(True)
        except Exception:
            # pipeline_mode / Buffered(1) unsupported on this jax version or backend:
            # fall back to default double-buffered resident operands.
            out2, down2, up2 = _run(False)
    else:
        out2, down2, up2 = _run(False)

    # TODO(synk): for down_sample / input_size too large to keep both weights
    # resident in VMEM (v7x 64 MiB), add a K-tiled variant with an f32 accumulator.
    out = out2.reshape(*lead, d)
    up = up2.reshape(*lead, d)
    down = (down2[:, :dd] if dd_p != dd else down2).reshape(*lead, dd)
    return out, down, up


def init_adapter_params(key, input_size, down_sample, dtype=jnp.float32):
    """BERT-style init (weights ~ N(0, 0.02), biases 0) with slightly perturbed
    LayerNorm affine so the affine path is exercised."""
    k1, k2, k3, k4 = jax.random.split(key, 4)
    w_down = 0.02 * jax.random.normal(k1, (input_size, down_sample), dtype)
    b_down = jnp.zeros((down_sample,), dtype)
    w_up = 0.02 * jax.random.normal(k2, (down_sample, input_size), dtype)
    b_up = jnp.zeros((input_size,), dtype)
    gamma = 1.0 + 0.1 * jax.random.normal(k3, (input_size,), dtype)
    beta = 0.1 * jax.random.normal(k4, (input_size,), dtype)
    return gamma, beta, w_down, b_down, w_up, b_up


def adapter_ref(x, residual, gamma, beta, w_down, b_down, w_up, b_up, eps=1e-5):
    mu = jnp.mean(x, axis=-1, keepdims=True)
    var = jnp.mean((x - mu) ** 2, axis=-1, keepdims=True)
    ln = (x - mu) * jax.lax.rsqrt(var + eps) * gamma + beta
    down = jnp.maximum(ln @ w_down + b_down, 0.0)
    up = down @ w_up + b_up
    out = up + residual
    return out, down, up


if __name__ == "__main__":
    D = 128
    DD = D // 2   # Adapter default: down_sample = input_size // 2

    key = jax.random.PRNGKey(0)
    kp = jax.random.fold_in(key, 7)
    gamma, beta, w_down, b_down, w_up, b_up = init_adapter_params(kp, D, DD)

    ok = True
    # One tile-aligned case and one ragged (non-multiple-of-tile) case to exercise
    # the masked-last-block path flagged in the review.
    for (B, N) in [(2, 8), (2, 13)]:
        kx, kr = jax.random.split(jax.random.fold_in(key, 1000 * B + N), 2)
        x = jax.random.normal(kx, (B, N, D), dtype=jnp.float32)
        residual = jax.random.normal(kr, (B, N, D), dtype=jnp.float32)

        out, down, up = adapter_pallas(x, residual, gamma, beta,
                                       w_down, b_down, w_up, b_up)
        out, down, up = jax.block_until_ready((out, down, up))

        ref_out, ref_down, ref_up = adapter_ref(x, residual, gamma, beta,
                                                w_down, b_down, w_up, b_up)

        assert out.shape == (B, N, D)
        assert down.shape == (B, N, DD)
        assert up.shape == (B, N, D)
        ok &= bool(jnp.allclose(out, ref_out, atol=1e-5, rtol=1e-5))
        ok &= bool(jnp.allclose(down, ref_down, atol=1e-5, rtol=1e-5))
        ok &= bool(jnp.allclose(up, ref_up, atol=1e-5, rtol=1e-5))

    if not ok:
        raise SystemExit("mismatch vs reference")
    print("KERNEL_OK")
</pallas_src>

<mosaic_0001>
module attributes {stable_mosaic.version = 11 : i64} {
  func.func @_adapter_kernel(%arg0: i32, %arg1: memref<8x128xf32, #tpu.memory_space<vmem>>, %arg2: memref<8x128xf32, #tpu.memory_space<vmem>>, %arg3: memref<1x128xf32, #tpu.memory_space<vmem>>, %arg4: memref<1x128xf32, #tpu.memory_space<vmem>>, %arg5: memref<128x128xf32, #tpu.memory_space<vmem>>, %arg6: memref<1x128xf32, #tpu.memory_space<vmem>>, %arg7: memref<128x128xf32, #tpu.memory_space<vmem>>, %arg8: memref<1x128xf32, #tpu.memory_space<vmem>>, %arg9: memref<8x128xf32, #tpu.memory_space<vmem>>, %arg10: memref<8x128xf32, #tpu.memory_space<vmem>>, %arg11: memref<8x128xf32, #tpu.memory_space<vmem>>) attributes {dimension_semantics = [#tpu.dimension_semantics<parallel>], iteration_bounds = array<i64: 2>, scalar_prefetch = 0 : i64, scratch_operands = 0 : i64, tpu.core_type = #tpu.core_type<tc>, window_params = [{transform_indices = @transform_0, window_bounds = array<i64: 8, 128>}, {transform_indices = @transform_1, window_bounds = array<i64: 8, 128>}, {pipeline_mode = #tpu.pipeline_mode<synchronous>, transform_indices = @transform_2, window_bounds = array<i64: 1, 128>}, {pipeline_mode = #tpu.pipeline_mode<synchronous>, transform_indices = @transform_3, window_bounds = array<i64: 1, 128>}, {pipeline_mode = #tpu.pipeline_mode<synchronous>, transform_indices = @transform_4, window_bounds = array<i64: 128, 128>}, {pipeline_mode = #tpu.pipeline_mode<synchronous>, transform_indices = @transform_5, window_bounds = array<i64: 1, 128>}, {pipeline_mode = #tpu.pipeline_mode<synchronous>, transform_indices = @transform_6, window_bounds = array<i64: 128, 128>}, {pipeline_mode = #tpu.pipeline_mode<synchronous>, transform_indices = @transform_7, window_bounds = array<i64: 1, 128>}, {transform_indices = @transform_8, window_bounds = array<i64: 8, 128>}, {transform_indices = @transform_9, window_bounds = array<i64: 8, 128>}, {transform_indices = @transform_10, window_bounds = array<i64: 8, 128>}]} {
    %c0 = arith.constant 0 : index
    %c0_0 = arith.constant 0 : index
    %0 = vector.load %arg1[%c0, %c0_0] : memref<8x128xf32, #tpu.memory_space<vmem>>, vector<8x128xf32>
    %cst = arith.constant dense<0.000000e+00> : vector<8xf32>
    %1 = vector.multi_reduction <add>, %0, %cst [1] : vector<8x128xf32> to vector<8xf32>
    %2 = vector.shape_cast %1 : vector<8xf32> to vector<8x1xf32>
    %cst_1 = arith.constant 1.280000e+02 : f32
    %3 = vector.broadcast %cst_1 : f32 to vector<8x1xf32>
    %4 = arith.divf %2, %3 : vector<8x1xf32>
    %5 = vector.broadcast %4 : vector<8x1xf32> to vector<8x128xf32>
    %6 = arith.subf %0, %5 : vector<8x128xf32>
    %7 = arith.mulf %6, %6 : vector<8x128xf32>
    %cst_2 = arith.constant dense<0.000000e+00> : vector<8xf32>
    %8 = vector.multi_reduction <add>, %7, %cst_2 [1] : vector<8x128xf32> to vector<8xf32>
    %9 = vector.shape_cast %8 : vector<8xf32> to vector<8x1xf32>
    %cst_3 = arith.constant 1.280000e+02 : f32
    %10 = vector.broadcast %cst_3 : f32 to vector<8x1xf32>
    %11 = arith.divf %9, %10 : vector<8x1xf32>
    %cst_4 = arith.constant 9.99999974E-6 : f32
    %12 = vector.broadcast %cst_4 : f32 to vector<8x1xf32>
    %13 = arith.addf %11, %12 : vector<8x1xf32>
    %14 = math.rsqrt %13 : vector<8x1xf32>
    %15 = vector.broadcast %14 : vector<8x1xf32> to vector<8x128xf32>
    %16 = arith.mulf %6, %15 : vector<8x128xf32>
    %c0_5 = arith.constant 0 : index
    %c0_6 = arith.constant 0 : index
    %17 = vector.load %arg3[%c0_5, %c0_6] : memref<1x128xf32, #tpu.memory_space<vmem>>, vector<1x128xf32>
    %18 = vector.broadcast %17 : vector<1x128xf32> to vector<8x128xf32>
    %19 = arith.mulf %16, %18 : vector<8x128xf32>
    %c0_7 = arith.constant 0 : index
    %c0_8 = arith.constant 0 : index
    %20 = vector.load %arg4[%c0_7, %c0_8] : memref<1x128xf32, #tpu.memory_space<vmem>>, vector<1x128xf32>
    %21 = vector.broadcast %20 : vector<1x128xf32> to vector<8x128xf32>
    %22 = arith.addf %19, %21 : vector<8x128xf32>
    %c0_9 = arith.constant 0 : index
    %c0_10 = arith.constant 0 : index
    %23 = vector.load %arg5[%c0_9, %c0_10] : memref<128x128xf32, #tpu.memory_space<vmem>>, vector<128x128xf32>
    %cst_11 = arith.constant dense<0.000000e+00> : vector<8x128xf32>
    %24 = tpu.matmul %22, %23, %cst_11 {dimension_numbers = #tpu.dot_dimension_numbers<[1], [0], [0], [1], [0, 0, 1, 1], [], []>} : vector<8x128xf32>, vector<128x128xf32>, vector<8x128xf32> -> vector<8x128xf32>
    %c0_12 = arith.constant 0 : index
    %c0_13 = arith.constant 0 : index
    %25 = vector.load %arg6[%c0_12, %c0_13] : memref<1x128xf32, #tpu.memory_space<vmem>>, vector<1x128xf32>
    %26 = vector.broadcast %25 : vector<1x128xf32> to vector<8x128xf32>
    %27 = arith.addf %24, %26 : vector<8x128xf32>
    %cst_14 = arith.constant 0.000000e+00 : f32
    %28 = vector.broadcast %cst_14 : f32 to vector<8x128xf32>
    %29 = arith.maximumf %27, %28 : vector<8x128xf32>
    %c0_15 = arith.constant 0 : index
    %c0_16 = arith.constant 0 : index
    %30 = vector.load %arg7[%c0_15, %c0_16] : memref<128x128xf32, #tpu.memory_space<vmem>>, vector<128x128xf32>
    %cst_17 = arith.constant dense<0.000000e+00> : vector<8x128xf32>
    %31 = tpu.matmul %29, %30, %cst_17 {dimension_numbers = #tpu.dot_dimension_numbers<[1], [0], [0], [1], [0, 0, 1, 1], [], []>} : vector<8x128xf32>, vector<128x128xf32>, vector<8x128xf32> -> vector<8x128xf32>
    %c0_18 = arith.constant 0 : index
    %c0_19 = arith.constant 0 : index
    %32 = vector.load %arg8[%c0_18, %c0_19] : memref<1x128xf32, #tpu.memory_space<vmem>>, vector<1x128xf32>
    %33 = vector.broadcast %32 : vector<1x128xf32> to vector<8x128xf32>
    %34 = arith.addf %31, %33 : vector<8x128xf32>
    %c0_20 = arith.constant 0 : index
    %c0_21 = arith.constant 0 : index
    %35 = vector.load %arg2[%c0_20, %c0_21] : memref<8x128xf32, #tpu.memory_space<vmem>>, vector<8x128xf32>
    %36 = arith.addf %34, %35 : vector<8x128xf32>
    %c0_22 = arith.constant 0 : index
    %c0_23 = arith.constant 0 : index
    %37 = vector.load %arg9[%c0_22, %c0_23] : memref<8x128xf32, #tpu.memory_space<vmem>>, vector<8x128xf32>
    tpu.vector_store %arg9[%c0_22, %c0_23], %36 {strides = array<i32>} : memref<8x128xf32, #tpu.memory_space<vmem>>, vector<8x128xf32>,
    %c0_24 = arith.constant 0 : index
    %c0_25 = arith.constant 0 : index
    %38 = vector.load %arg10[%c0_24, %c0_25] : memref<8x128xf32, #tpu.memory_space<vmem>>, vector<8x128xf32>
    tpu.vector_store %arg10[%c0_24, %c0_25], %29 {strides = array<i32>} : memref<8x128xf32, #tpu.memory_space<vmem>>, vector<8x128xf32>,
    %c0_26 = arith.constant 0 : index
    %c0_27 = arith.constant 0 : index
    %39 = vector.load %arg11[%c0_26, %c0_27] : memref<8x128xf32, #tpu.memory_space<vmem>>, vector<8x128xf32>
    tpu.vector_store %arg11[%c0_26, %c0_27], %34 {strides = array<i32>} : memref<8x128xf32, #tpu.memory_space<vmem>>, vector<8x128xf32>,
    return
  }
  func.func @transform_0(%arg0: i32) -> (i32, i32) {
    %c0_i32 = arith.constant 0 : i32
    %c0_i32_0 = arith.constant 0 : i32
    return %arg0, %c0_i32 : i32, i32
  }
  func.func @transform_1(%arg0: i32) -> (i32, i32) {
    %c0_i32 = arith.constant 0 : i32
    %c0_i32_0 = arith.constant 0 : i32
    return %arg0, %c0_i32 : i32, i32
  }
  func.func @transform_2(%arg0: i32) -> (i32, i32) {
    %c0_i32 = arith.constant 0 : i32
    %c0_i32_0 = arith.constant 0 : i32
    %c0_i32_1 = arith.constant 0 : i32
    return %c0_i32, %c0_i32_0 : i32, i32
  }
  func.func @transform_3(%arg0: i32) -> (i32, i32) {
    %c0_i32 = arith.constant 0 : i32
    %c0_i32_0 = arith.constant 0 : i32
    %c0_i32_1 = arith.constant 0 : i32
    return %c0_i32, %c0_i32_0 : i32, i32
  }
  func.func @transform_4(%arg0: i32) -> (i32, i32) {
    %c0_i32 = arith.constant 0 : i32
    %c0_i32_0 = arith.constant 0 : i32
    %c0_i32_1 = arith.constant 0 : i32
    return %c0_i32, %c0_i32_0 : i32, i32
  }
  func.func @transform_5(%arg0: i32) -> (i32, i32) {
    %c0_i32 = arith.constant 0 : i32
    %c0_i32_0 = arith.constant 0 : i32
    %c0_i32_1 = arith.constant 0 : i32
    return %c0_i32, %c0_i32_0 : i32, i32
  }
  func.func @transform_6(%arg0: i32) -> (i32, i32) {
    %c0_i32 = arith.constant 0 : i32
    %c0_i32_0 = arith.constant 0 : i32
    %c0_i32_1 = arith.constant 0 : i32
    return %c0_i32, %c0_i32_0 : i32, i32
  }
  func.func @transform_7(%arg0: i32) -> (i32, i32) {
    %c0_i32 = arith.constant 0 : i32
    %c0_i32_0 = arith.constant 0 : i32
    %c0_i32_1 = arith.constant 0 : i32
    return %c0_i32, %c0_i32_0 : i32, i32
  }
  func.func @transform_8(%arg0: i32) -> (i32, i32) {
    %c0_i32 = arith.constant 0 : i32
    %c0_i32_0 = arith.constant 0 : i32
    return %arg0, %c0_i32 : i32, i32
  }
  func.func @transform_9(%arg0: i32) -> (i32, i32) {
    %c0_i32 = arith.constant 0 : i32
    %c0_i32_0 = arith.constant 0 : i32
    return %arg0, %c0_i32 : i32, i32
  }
  func.func @transform_10(%arg0: i32) -> (i32, i32) {
    %c0_i32 = arith.constant 0 : i32
    %c0_i32_0 = arith.constant 0 : i32
    return %arg0, %c0_i32 : i32, i32
  }
}

module attributes {stable_mosaic.version = 11 : i64} {
  func.func @_adapter_kernel(%arg0: i32, %arg1: memref<8x128xf32, #tpu.memory_space<vmem>>, %arg2: memref<8x128xf32, #tpu.memory_space<vmem>>, %arg3: memref<1x128xf32, #tpu.memory_space<vmem>>, %arg4: memref<1x128xf32, #tpu.memory_space<vmem>>, %arg5: memref<128x128xf32, #tpu.memory_space<vmem>>, %arg6: memref<1x128xf32, #tpu.memory_space<vmem>>, %arg7: memref<128x128xf32, #tpu.memory_space<vmem>>, %arg8: memref<1x128xf32, #tpu.memory_space<vmem>>, %arg9: memref<8x128xf32, #tpu.memory_space<vmem>>, %arg10: memref<8x128xf32, #tpu.memory_space<vmem>>, %arg11: memref<8x128xf32, #tpu.memory_space<vmem>>) attributes {dimension_semantics = [#tpu.dimension_semantics<parallel>], iteration_bounds = array<i64: 2>, scalar_prefetch = 0 : i64, scratch_operands = 0 : i64, tpu.core_type = #tpu.core_type<tc>, window_params = [{transform_indices = @transform_0, window_bounds = array<i64: 8, 128>}, {transform_indices = @transform_1, window_bounds = array<i64: 8, 128>}, {pipeline_mode = #tpu.pipeline_mode<synchronous>, transform_indices = @transform_2, window_bounds = array<i64: 1, 128>}, {pipeline_mode = #tpu.pipeline_mode<synchronous>, transform_indices = @transform_3, window_bounds = array<i64: 1, 128>}, {pipeline_mode = #tpu.pipeline_mode<synchronous>, transform_indices = @transform_4, window_bounds = array<i64: 128, 128>}, {pipeline_mode = #tpu.pipeline_mode<synchronous>, transform_indices = @transform_5, window_bounds = array<i64: 1, 128>}, {pipeline_mode = #tpu.pipeline_mode<synchronous>, transform_indices = @transform_6, window_bounds = array<i64: 128, 128>}, {pipeline_mode = #tpu.pipeline_mode<synchronous>, transform_indices = @transform_7, window_bounds = array<i64: 1, 128>}, {transform_indices = @transform_8, window_bounds = array<i64: 8, 128>}, {transform_indices = @transform_9, window_bounds = array<i64: 8, 128>}, {transform_indices = @transform_10, window_bounds = array<i64: 8, 128>}]} {
    %c0 = arith.constant 0 : index
    %c0_0 = arith.constant 0 : index
    %0 = vector.load %arg1[%c0, %c0_0] : memref<8x128xf32, #tpu.memory_space<vmem>>, vector<8x128xf32>
    %cst = arith.constant dense<0.000000e+00> : vector<8xf32>
    %1 = vector.multi_reduction <add>, %0, %cst [1] : vector<8x128xf32> to vector<8xf32>
    %2 = vector.shape_cast %1 : vector<8xf32> to vector<8x1xf32>
    %cst_1 = arith.constant 1.280000e+02 : f32
    %3 = vector.broadcast %cst_1 : f32 to vector<8x1xf32>
    %4 = arith.divf %2, %3 : vector<8x1xf32>
    %5 = vector.broadcast %4 : vector<8x1xf32> to vector<8x128xf32>
    %6 = arith.subf %0, %5 : vector<8x128xf32>
    %7 = arith.mulf %6, %6 : vector<8x128xf32>
    %cst_2 = arith.constant dense<0.000000e+00> : vector<8xf32>
    %8 = vector.multi_reduction <add>, %7, %cst_2 [1] : vector<8x128xf32> to vector<8xf32>
    %9 = vector.shape_cast %8 : vector<8xf32> to vector<8x1xf32>
    %cst_3 = arith.constant 1.280000e+02 : f32
    %10 = vector.broadcast %cst_3 : f32 to vector<8x1xf32>
    %11 = arith.divf %9, %10 : vector<8x1xf32>
    %cst_4 = arith.constant 9.99999974E-6 : f32
    %12 = vector.broadcast %cst_4 : f32 to vector<8x1xf32>
    %13 = arith.addf %11, %12 : vector<8x1xf32>
    %14 = math.rsqrt %13 : vector<8x1xf32>
    %15 = vector.broadcast %14 : vector<8x1xf32> to vector<8x128xf32>
    %16 = arith.mulf %6, %15 : vector<8x128xf32>
    %c0_5 = arith.constant 0 : index
    %c0_6 = arith.constant 0 : index
    %17 = vector.load %arg3[%c0_5, %c0_6] : memref<1x128xf32, #tpu.memory_space<vmem>>, vector<1x128xf32>
    %18 = vector.broadcast %17 : vector<1x128xf32> to vector<8x128xf32>
    %19 = arith.mulf %16, %18 : vector<8x128xf32>
    %c0_7 = arith.constant 0 : index
    %c0_8 = arith.constant 0 : index
    %20 = vector.load %arg4[%c0_7, %c0_8] : memref<1x128xf32, #tpu.memory_space<vmem>>, vector<1x128xf32>
    %21 = vector.broadcast %20 : vector<1x128xf32> to vector<8x128xf32>
    %22 = arith.addf %19, %21 : vector<8x128xf32>
    %c0_9 = arith.constant 0 : index
    %c0_10 = arith.constant 0 : index
    %23 = vector.load %arg5[%c0_9, %c0_10] : memref<128x128xf32, #tpu.memory_space<vmem>>, vector<128x128xf32>
    %cst_11 = arith.constant dense<0.000000e+00> : vector<8x128xf32>
    %24 = tpu.matmul %22, %23, %cst_11 {dimension_numbers = #tpu.dot_dimension_numbers<[1], [0], [0], [1], [0, 0, 1, 1], [], []>} : vector<8x128xf32>, vector<128x128xf32>, vector<8x128xf32> -> vector<8x128xf32>
    %c0_12 = arith.constant 0 : index
    %c0_13 = arith.constant 0 : index
    %25 = vector.load %arg6[%c0_12, %c0_13] : memref<1x128xf32, #tpu.memory_space<vmem>>, vector<1x128xf32>
    %26 = vector.broadcast %25 : vector<1x128xf32> to vector<8x128xf32>
    %27 = arith.addf %24, %26 : vector<8x128xf32>
    %cst_14 = arith.constant 0.000000e+00 : f32
    %28 = vector.broadcast %cst_14 : f32 to vector<8x128xf32>
    %29 = arith.maximumf %27, %28 : vector<8x128xf32>
    %c0_15 = arith.constant 0 : index
    %c0_16 = arith.constant 0 : index
    %30 = vector.load %arg7[%c0_15, %c0_16] : memref<128x128xf32, #tpu.memory_space<vmem>>, vector<128x128xf32>
    %cst_17 = arith.constant dense<0.000000e+00> : vector<8x128xf32>
    %31 = tpu.matmul %29, %30, %cst_17 {dimension_numbers = #tpu.dot_dimension_numbers<[1], [0], [0], [1], [0, 0, 1, 1], [], []>} : vector<8x128xf32>, vector<128x128xf32>, vector<8x128xf32> -> vector<8x128xf32>
    %c0_18 = arith.constant 0 : index
    %c0_19 = arith.constant 0 : index
    %32 = vector.load %arg8[%c0_18, %c0_19] : memref<1x128xf32, #tpu.memory_space<vmem>>, vector<1x128xf32>
    %33 = vector.broadcast %32 : vector<1x128xf32> to vector<8x128xf32>
    %34 = arith.addf %31, %33 : vector<8x128xf32>
    %c0_20 = arith.constant 0 : index
    %c0_21 = arith.constant 0 : index
    %35 = vector.load %arg2[%c0_20, %c0_21] : memref<8x128xf32, #tpu.memory_space<vmem>>, vector<8x128xf32>
    %36 = arith.addf %34, %35 : vector<8x128xf32>
    %c0_22 = arith.constant 0 : index
    %c0_23 = arith.constant 0 : index
    %37 = vector.load %arg9[%c0_22, %c0_23] : memref<8x128xf32, #tpu.memory_space<vmem>>, vector<8x128xf32>
    tpu.vector_store %arg9[%c0_22, %c0_23], %36 {strides = array<i32>} : memref<8x128xf32, #tpu.memory_space<vmem>>, vector<8x128xf32>,
    %c0_24 = arith.constant 0 : index
    %c0_25 = arith.constant 0 : index
    %38 = vector.load %arg10[%c0_24, %c0_25] : memref<8x128xf32, #tpu.memory_space<vmem>>, vector<8x128xf32>
    tpu.vector_store %arg10[%c0_24, %c0_25], %29 {strides = array<i32>} : memref<8x128xf32, #tpu.memory_space<vmem>>, vector<8x128xf32>,
    %c0_26 = arith.constant 0 : index
    %c0_27 = arith.constant 0 : index
    %39 = vector.load %arg11[%c0_26, %c0_27] : memref<8x128xf32, #tpu.memory_space<vmem>>, vector<8x128xf32>
    tpu.vector_store %arg11[%c0_26, %c0_27], %34 {strides = array<i32>} : memref<8x128xf32, #tpu.memory_space<vmem>>, vector<8x128xf32>,
    return
  }
  func.func @transform_0(%arg0: i32) -> (i32, i32) {
    %c0_i32 = arith.constant 0 : i32
    %c0_i32_0 = arith.constant 0 : i32
    return %arg0, %c0_i32 : i32, i32
  }
  func.func @transform_1(%arg0: i32) -> (i32, i32) {
    %c0_i32 = arith.constant 0 : i32
    %c0_i32_0 = arith.constant 0 : i32
    return %arg0, %c0_i32 : i32, i32
  }
  func.func @transform_2(%arg0: i32) -> (i32, i32) {
    %c0_i32 = arith.constant 0 : i32
    %c0_i32_0 = arith.constant 0 : i32
    %c0_i32_1 = arith.constant 0 : i32
    return %c0_i32, %c0_i32_0 : i32, i32
  }
  func.func @transform_3(%arg0: i32) -> (i32, i32) {
    %c0_i32 = arith.constant 0 : i32
    %c0_i32_0 = arith.constant 0 : i32
    %c0_i32_1 = arith.constant 0 : i32
    return %c0_i32, %c0_i32_0 : i32, i32
  }
  func.func @transform_4(%arg0: i32) -> (i32, i32) {
    %c0_i32 = arith.constant 0 : i32
    %c0_i32_0 = arith.constant 0 : i32
    %c0_i32_1 = arith.constant 0 : i32
    return %c0_i32, %c0_i32_0 : i32, i32
  }
  func.func @transform_5(%arg0: i32) -> (i32, i32) {
    %c0_i32 = arith.constant 0 : i32
    %c0_i32_0 = arith.constant 0 : i32
    %c0_i32_1 = arith.constant 0 : i32
    return %c0_i32, %c0_i32_0 : i32, i32
  }
  func.func @transform_6(%arg0: i32) -> (i32, i32) {
    %c0_i32 = arith.constant 0 : i32
    %c0_i32_0 = arith.constant 0 : i32
    %c0_i32_1 = arith.constant 0 : i32
    return %c0_i32, %c0_i32_0 : i32, i32
  }
  func.func @transform_7(%arg0: i32) -> (i32, i32) {
    %c0_i32 = arith.constant 0 : i32
    %c0_i32_0 = arith.constant 0 : i32
    %c0_i32_1 = arith.constant 0 : i32
    return %c0_i32, %c0_i32_0 : i32, i32
  }
  func.func @transform_8(%arg0: i32) -> (i32, i32) {
    %c0_i32 = arith.constant 0 : i32
    %c0_i32_0 = arith.constant 0 : i32
    return %arg0, %c0_i32 : i32, i32
  }
  func.func @transform_9(%arg0: i32) -> (i32, i32) {
    %c0_i32 = arith.constant 0 : i32
    %c0_i32_0 = arith.constant 0 : i32
    return %arg0, %c0_i32 : i32, i32
  }
  func.func @transform_10(%arg0: i32) -> (i32, i32) {
    %c0_i32 = arith.constant 0 : i32
    %c0_i32_0 = arith.constant 0 : i32
    return %arg0, %c0_i32 : i32, i32
  }
}

</mosaic_0001>

<llo_original>
// kernel: tpu_custom_call.1
$region0: #{tpu_custom_call.1}
  #allocation0 [shape = 'u32[]', space=smem, size = 0x4, offset = 0x4, fixed_abs, tag = 'smem constant byte address 0x4 - core index']
  #allocation1 [shape = 'u32[144,128]{1,0:T(1,128)}', space=vmem, size = 0x12000, scoped, tag = 'internal scratch']
  %s0 = inlined_call_operand.hbm [shape: f32[16,128], index: 0, kind: input, shape index: {}]
  %s1 = inlined_call_operand.hbm [shape: f32[16,128], index: 1, kind: input, shape index: {}]
  %s2 = inlined_call_operand.vmem [shape: f32[1,128], index: 2, kind: input, shape index: {}]
  %s3 = inlined_call_operand.vmem [shape: f32[1,128], index: 3, kind: input, shape index: {}]
  %s4 = inlined_call_operand.hbm [shape: f32[128,128], index: 4, kind: input, shape index: {}]
  %s5 = inlined_call_operand.vmem [shape: f32[1,128], index: 5, kind: input, shape index: {}]
  %s6 = inlined_call_operand.hbm [shape: f32[128,128], index: 6, kind: input, shape index: {}]
  %s7 = inlined_call_operand.vmem [shape: f32[1,128], index: 7, kind: input, shape index: {}]
  %s8 = inlined_call_operand.hbm [shape: f32[16,128], index: 8, kind: output, shape index: {0}]
  %s9 = inlined_call_operand.hbm [shape: f32[16,128], index: 9, kind: output, shape index: {1}]
  %s10 = inlined_call_operand.hbm [shape: f32[16,128], index: 10, kind: output, shape index: {2}]
  %11 = xla_tuple %s8, %s9, %s10
  %s12 = sld [smem:[#allocation0]]
  $region97: #{tpu_custom_call.1} parent=0
    _
  %s14 = ssub.s32 1, %s12
  %s15 = scalar_select 0, %s14, %s12
  $region1: #{tpu_custom_call.1} parent=0
    #allocation2 [shape = 'u8[8192]{0}', space=vmem, size = 0x2000, scoped, tag = 'input window, operand 0']
    #allocation3 [shape = 's32[2]{0}', space=sflag, size = 0x8, scoped, tag = 'scoped memory for tpu_custom_call.1']
    #allocation4 [shape = 's32[2]{0}', space=sflag, size = 0x8, scoped, tag = 'scoped memory for tpu_custom_call.1']
    #allocation5 [shape = 'u8[8192]{0}', space=vmem, size = 0x2000, scoped, tag = 'input window, operand 1']
    #allocation6 [shape = 's32[2]{0}', space=sflag, size = 0x8, scoped, tag = 'scoped memory for tpu_custom_call.1']
    #allocation7 [shape = 'u8[65536]{0}', space=vmem, size = 0x10000, scoped, tag = 'input window, operand 4, single buffered']
    #allocation8 [shape = 'u8[65536]{0}', space=vmem, size = 0x10000, scoped, tag = 'input window, operand 6, single buffered']
    #allocation9 [shape = 's32[1]{0}', space=sflag, size = 0x4, scoped, tag = 'scoped memory for tpu_custom_call.1']
    #allocation10 [shape = 'u8[8192]{0}', space=vmem, size = 0x2000, scoped, tag = 'output window, operand 0']
    #allocation11 [shape = 'u8[8192]{0}', space=vmem, size = 0x2000, scoped, tag = 'output window, operand 1']
    #allocation12 [shape = 's32[2]{0}', space=sflag, size = 0x8, scoped, tag = 'scoped memory for tpu_custom_call.1']
    #allocation13 [shape = 'u8[8192]{0}', space=vmem, size = 0x2000, scoped, tag = 'output window, operand 2']
    %16 = vsyncpa [#allocation3], 0
    %s17 = scalar_lea.sflag [#allocation3], 1
    %18 = vsyncpa %s17, 0
    %19 = vsyncpa [#allocation6], 0
    %s20 = scalar_lea.sflag [#allocation6], 1
    %21 = vsyncpa %s20, 0
    %22 = vsyncpa [#allocation9], 0
    %23 = vsyncpa [#allocation4], 0
    %s24 = scalar_lea.sflag [#allocation4], 1
    %25 = vsyncpa %s24, 0
    %26 = vsyncpa [#allocation12], 0
    %s27 = scalar_lea.sflag [#allocation12], 1
    %28 = vsyncpa %s27, 0
    loop: start=0, step=1, limit=4
    $region2: #{tpu_custom_call.1} parent=1 // loop_pre_header
      _
    $region3: #{tpu_custom_call.1} parent=1 // loop_header
      %s30 = sphi 0, %s34
      %p31 = scmp.ge.s32.totalorder %s30, 4
      %s40 = sphi 0, %s42
      %s43 = sphi 0, %s40
      %s44 = sphi 0, %s43
      %s60 = sphi 0, %s44
      %s66 = sphi 0, %s68
      %s69 = sphi 0, %s66
      %s70 = sphi 0, %s69
      %s86 = sphi 0, %s70
      %s90 = sphi 0, %s90
      %s92 = sphi 0, %s90
      %s93 = sphi 0, %s92
      %s107 = sphi 0, %s93
      %s111 = sphi 0, %s111
      %s113 = sphi 0, %s111
      %s114 = sphi 0, %s113
      %s128 = sphi 0, %s114
      %s132 = sphi 0, %s132
      %s134 = sphi 0, %s132
      %s135 = sphi 0, %s134
      %s149 = sphi 0, %s135
      %s153 = sphi 0, %s153
      %s155 = sphi 0, %s153
      %s156 = sphi 0, %s155
      %s170 = sphi 0, %s156
      %s174 = sphi 0, %s174
      %s176 = sphi 0, %s174
      %s177 = sphi 0, %s176
      %s191 = sphi 0, %s177
      %s195 = sphi 0, %s195
      %s197 = sphi 0, %s195
      %s198 = sphi 0, %s197
      %s212 = sphi 0, %s198
      %s218 = sphi 0, %s220
      %s221 = sphi 0, %s218
      %s222 = sphi 0, %s221
      %s238 = sphi 0, %s222
      %s244 = sphi 0, %s246
      %s247 = sphi 0, %s244
      %s248 = sphi 0, %s247
      %s264 = sphi 0, %s248
      %s270 = sphi 0, %s272
      %s273 = sphi 0, %s270
      %s274 = sphi 0, %s273
      %s290 = sphi 0, %s274
    $region4: #{tpu_custom_call.1} parent=1 // loop_header_branch
      %33 = sbr.rel (%p31) target = $region8
    $region5: #{tpu_custom_call.1} parent=1 // loop_body
      %s35 = ssub.s32 %s30, 1
      %s36 = ssub.s32 %s30, 2
      %s37 = sadd.s32 %s30, 1
      %s38 = ssub.s32 %s30, %s37
      %p39 = scmp.eq.s32.totalorder %s38, 0
      %s41 = sadd.s32 %s40, 1
      %s42 = scalar_select %p39, %s40, %s41
      %p45 = pneg %p39
      %p46 = scmp.eq.s32.totalorder %s30, 1
      %p47 = por %p45, %p46
      %p48 = scmp.ne.s32.totalorder %s40, %s43
      %p49 = scmp.eq.s32.totalorder %s30, 0
      %p50 = por %p48, %p49
      %p51 = scmp.ne.s32.totalorder %s40, %s43
      %p52 = scmp.eq.s32.totalorder %s35, 1
      %p53 = por %p51, %p52
      %p54 = scmp.ne.s32.totalorder %s43, %s44
      %p55 = scmp.eq.s32.totalorder %s35, 0
      %p56 = por %p54, %p55
      %p57 = scmp.ne.s32.totalorder %s43, %s44
      %p58 = scmp.eq.s32.totalorder %s36, 1
      %p59 = por %p57, %p58
      %p61 = scmp.ne.s32.totalorder %s44, %s60
      %p62 = scmp.eq.s32.totalorder %s36, 0
      %p63 = por %p61, %p62
      %s64 = ssub.s32 %s30, %s37
      %p65 = scmp.eq.s32.totalorder %s64, 0
      %s67 = sadd.s32 %s66, 1
      %s68 = scalar_select %p65, %s66, %s67
      %p71 = pneg %p65
      %p72 = scmp.eq.s32.totalorder %s30, 1
      %p73 = por %p71, %p72
      %p74 = scmp.ne.s32.totalorder %s66, %s69
      %p75 = scmp.eq.s32.totalorder %s30, 0
      %p76 = por %p74, %p75
      %p77 = scmp.ne.s32.totalorder %s66, %s69
      %p78 = scmp.eq.s32.totalorder %s35, 1
      %p79 = por %p77, %p78
      %p80 = scmp.ne.s32.totalorder %s69, %s70
      %p81 = scmp.eq.s32.totalorder %s35, 0
      %p82 = por %p80, %p81
      %p83 = scmp.ne.s32.totalorder %s69, %s70
      %p84 = scmp.eq.s32.totalorder %s36, 1
      %p85 = por %p83, %p84
      %p87 = scmp.ne.s32.totalorder %s70, %s86
      %p88 = scmp.eq.s32.totalorder %s36, 0
      %p89 = por %p87, %p88
      %s91 = sadd.s32 %s90, 1
      %p94 = scmp.eq.s32.totalorder %s30, 1
      %p95 = scmp.ne.s32.totalorder %s90, %s92
      %p96 = scmp.eq.s32.totalorder %s30, 0
      %p97 = por %p95, %p96
      %p98 = scmp.ne.s32.totalorder %s90, %s92
      %p99 = scmp.eq.s32.totalorder %s35, 1
      %p100 = por %p98, %p99
      %p101 = scmp.ne.s32.totalorder %s92, %s93
      %p102 = scmp.eq.s32.totalorder %s35, 0
      %p103 = por %p101, %p102
      %p104 = scmp.ne.s32.totalorder %s92, %s93
      %p105 = scmp.eq.s32.totalorder %s36, 1
      %p106 = por %p104, %p105
      %p108 = scmp.ne.s32.totalorder %s93, %s107
      %p109 = scmp.eq.s32.totalorder %s36, 0
      %p110 = por %p108, %p109
      %s112 = sadd.s32 %s111, 1
      %p115 = scmp.eq.s32.totalorder %s30, 1
      %p116 = scmp.ne.s32.totalorder %s111, %s113
      %p117 = scmp.eq.s32.totalorder %s30, 0
      %p118 = por %p116, %p117
      %p119 = scmp.ne.s32.totalorder %s111, %s113
      %p120 = scmp.eq.s32.totalorder %s35, 1
      %p121 = por %p119, %p120
      %p122 = scmp.ne.s32.totalorder %s113, %s114
      %p123 = scmp.eq.s32.totalorder %s35, 0
      %p124 = por %p122, %p123
      %p125 = scmp.ne.s32.totalorder %s113, %s114
      %p126 = scmp.eq.s32.totalorder %s36, 1
      %p127 = por %p125, %p126
      %p129 = scmp.ne.s32.totalorder %s114, %s128
      %p130 = scmp.eq.s32.totalorder %s36, 0
      %p131 = por %p129, %p130
      %s133 = sadd.s32 %s132, 1
      %p136 = scmp.eq.s32.totalorder %s30, 1
      %p137 = scmp.ne.s32.totalorder %s132, %s134
      %p138 = scmp.eq.s32.totalorder %s30, 0
      %p139 = por %p137, %p138
      %p140 = scmp.ne.s32.totalorder %s132, %s134
      %p141 = scmp.eq.s32.totalorder %s35, 1
      %p142 = por %p140, %p141
      %p143 = scmp.ne.s32.totalorder %s134, %s135
      %p144 = scmp.eq.s32.totalorder %s35, 0
      %p145 = por %p143, %p144
      %p146 = scmp.ne.s32.totalorder %s134, %s135
      %p147 = scmp.eq.s32.totalorder %s36, 1
      %p148 = por %p146, %p147
      %p150 = scmp.ne.s32.totalorder %s135, %s149
      %p151 = scmp.eq.s32.totalorder %s36, 0
      %p152 = por %p150, %p151
      %s154 = sadd.s32 %s153, 1
      %p157 = scmp.eq.s32.totalorder %s30, 1
      %p158 = scmp.ne.s32.totalorder %s153, %s155
      %p159 = scmp.eq.s32.totalorder %s30, 0
      %p160 = por %p158, %p159
      %p161 = scmp.ne.s32.totalorder %s153, %s155
      %p162 = scmp.eq.s32.totalorder %s35, 1
      %p163 = por %p161, %p162
      %p164 = scmp.ne.s32.totalorder %s155, %s156
      %p165 = scmp.eq.s32.totalorder %s35, 0
      %p166 = por %p164, %p165
      %p167 = scmp.ne.s32.totalorder %s155, %s156
      %p168 = scmp.eq.s32.totalorder %s36, 1
      %p169 = por %p167, %p168
      %p171 = scmp.ne.s32.totalorder %s156, %s170
      %p172 = scmp.eq.s32.totalorder %s36, 0
      %p173 = por %p171, %p172
      %s175 = sadd.s32 %s174, 1
      %p178 = scmp.eq.s32.totalorder %s30, 1
      %p179 = scmp.ne.s32.totalorder %s174, %s176
      %p180 = scmp.eq.s32.totalorder %s30, 0
      %p181 = por %p179, %p180
      %p182 = scmp.ne.s32.totalorder %s174, %s176
      %p183 = scmp.eq.s32.totalorder %s35, 1
      %p184 = por %p182, %p183
      %p185 = scmp.ne.s32.totalorder %s176, %s177
      %p186 = scmp.eq.s32.totalorder %s35, 0
      %p187 = por %p185, %p186
      %p188 = scmp.ne.s32.totalorder %s176, %s177
      %p189 = scmp.eq.s32.totalorder %s36, 1
      %p190 = por %p188, %p189
      %p192 = scmp.ne.s32.totalorder %s177, %s191
      %p193 = scmp.eq.s32.totalorder %s36, 0
      %p194 = por %p192, %p193
      %s196 = sadd.s32 %s195, 1
      %p199 = scmp.eq.s32.totalorder %s30, 1
      %p200 = scmp.ne.s32.totalorder %s195, %s197
      %p201 = scmp.eq.s32.totalorder %s30, 0
      %p202 = por %p200, %p201
      %p203 = scmp.ne.s32.totalorder %s195, %s197
      %p204 = scmp.eq.s32.totalorder %s35, 1
      %p205 = por %p203, %p204
      %p206 = scmp.ne.s32.totalorder %s197, %s198
      %p207 = scmp.eq.s32.totalorder %s35, 0
      %p208 = por %p206, %p207
      %p209 = scmp.ne.s32.totalorder %s197, %s198
      %p210 = scmp.eq.s32.totalorder %s36, 1
      %p211 = por %p209, %p210
      %p213 = scmp.ne.s32.totalorder %s198, %s212
      %p214 = scmp.eq.s32.totalorder %s36, 0
      %p215 = por %p213, %p214
      %s216 = ssub.s32 %s30, %s37
      %p217 = scmp.eq.s32.totalorder %s216, 0
      %s219 = sadd.s32 %s218, 1
      %s220 = scalar_select %p217, %s218, %s219
      %p223 = pneg %p217
      %p224 = scmp.eq.s32.totalorder %s30, 1
      %p225 = por %p223, %p224
      %p226 = scmp.ne.s32.totalorder %s218, %s221
      %p227 = scmp.eq.s32.totalorder %s30, 0
      %p228 = por %p226, %p227
      %p229 = scmp.ne.s32.totalorder %s218, %s221
      %p230 = scmp.eq.s32.totalorder %s35, 1
      %p231 = por %p229, %p230
      %p232 = scmp.ne.s32.totalorder %s221, %s222
      %p233 = scmp.eq.s32.totalorder %s35, 0
      %p234 = por %p232, %p233
      %p235 = scmp.ne.s32.totalorder %s221, %s222
      %p236 = scmp.eq.s32.totalorder %s36, 1
      %p237 = por %p235, %p236
      %p239 = scmp.ne.s32.totalorder %s222, %s238
      %p240 = scmp.eq.s32.totalorder %s36, 0
      %p241 = por %p239, %p240
      %s242 = ssub.s32 %s30, %s37
      %p243 = scmp.eq.s32.totalorder %s242, 0
      %s245 = sadd.s32 %s244, 1
      %s246 = scalar_select %p243, %s244, %s245
      %p249 = pneg %p243
      %p250 = scmp.eq.s32.totalorder %s30, 1
      %p251 = por %p249, %p250
      %p252 = scmp.ne.s32.totalorder %s244, %s247
      %p253 = scmp.eq.s32.totalorder %s30, 0
      %p254 = por %p252, %p253
      %p255 = scmp.ne.s32.totalorder %s244, %s247
      %p256 = scmp.eq.s32.totalorder %s35, 1
      %p257 = por %p255, %p256
      %p258 = scmp.ne.s32.totalorder %s247, %s248
      %p259 = scmp.eq.s32.totalorder %s35, 0
      %p260 = por %p258, %p259
      %p261 = scmp.ne.s32.totalorder %s247, %s248
      %p262 = scmp.eq.s32.totalorder %s36, 1
      %p263 = por %p261, %p262
      %p265 = scmp.ne.s32.totalorder %s248, %s264
      %p266 = scmp.eq.s32.totalorder %s36, 0
      %p267 = por %p265, %p266
      %s268 = ssub.s32 %s30, %s37
      %p269 = scmp.eq.s32.totalorder %s268, 0
      %s271 = sadd.s32 %s270, 1
      %s272 = scalar_select %p269, %s270, %s271
      %p275 = pneg %p269
      %p276 = scmp.eq.s32.totalorder %s30, 1
      %p277 = por %p275, %p276
      %p278 = scmp.ne.s32.totalorder %s270, %s273
      %p279 = scmp.eq.s32.totalorder %s30, 0
      %p280 = por %p278, %p279
      %p281 = scmp.ne.s32.totalorder %s270, %s273
      %p282 = scmp.eq.s32.totalorder %s35, 1
      %p283 = por %p281, %p282
      %p284 = scmp.ne.s32.totalorder %s273, %s274
      %p285 = scmp.eq.s32.totalorder %s35, 0
      %p286 = por %p284, %p285
      %p287 = scmp.ne.s32.totalorder %s273, %s274
      %p288 = scmp.eq.s32.totalorder %s36, 1
      %p289 = por %p287, %p288
      %p291 = scmp.ne.s32.totalorder %s274, %s290
      %p292 = scmp.eq.s32.totalorder %s36, 0
      %p293 = por %p291, %p292
      %p294 = scmp.le.s32.totalorder 1, %s30
      %p295 = scmp.lt.s32.totalorder %s30, 3
      %p296 = pnand %p294, %p295
      %p297 = pneg %p296
      // Predicated region
      $region9: #{tpu_custom_call.1} parent=5 // pred_check
        _
      $region10: #{tpu_custom_call.1} parent=5 // pred_check_branch
        %299 = sbr.rel (%p296) target = $region12
      $region11: #{tpu_custom_call.1} parent=5 // pred_region
        %s300 = ssub.s32 %s30, 1
        // Predicated region
        $region13: #{tpu_custom_call.1} parent=11 // pred_check
          %p301 = pneg %p103
        $region14: #{tpu_custom_call.1} parent=11 // pred_check_branch
          %303 = sbr.rel (%p301) target = $region16
        $region15: #{tpu_custom_call.1} parent=11 // pred_region
          _
        $region16: #{tpu_custom_call.1} parent=11 // pred_fallthru
          _
        // Predicated region
        $region17: #{tpu_custom_call.1} parent=11 // pred_check
          %p304 = pneg %p124
        $region18: #{tpu_custom_call.1} parent=11 // pred_check_branch
          %306 = sbr.rel (%p304) target = $region20
        $region19: #{tpu_custom_call.1} parent=11 // pred_region
          _
        $region20: #{tpu_custom_call.1} parent=11 // pred_fallthru
          _
        // Predicated region
        $region21: #{tpu_custom_call.1} parent=11 // pred_check
          %p307 = pneg %p145
        $region22: #{tpu_custom_call.1} parent=11 // pred_check_branch
          %309 = sbr.rel (%p307) target = $region24
        $region23: #{tpu_custom_call.1} parent=11 // pred_region
          %s311 = ssub.s32 2048, 2048
          %312 = vsyncadd [#allocation6], %s311
          %s313 = sshll.u32 [#allocation7], 4
          %s314 = int_to_ptr.vmem [resolvable:$true] %s313
          %319 = dma.hbm_to_vmem [thread:$0]  %s4, 2048, %s314, [#allocation6], 128, 128, 8
        $region24: #{tpu_custom_call.1} parent=11 // pred_fallthru
          _
        // Predicated region
        $region25: #{tpu_custom_call.1} parent=11 // pred_check
          %p320 = pneg %p166
        $region26: #{tpu_custom_call.1} parent=11 // pred_check_branch
          %322 = sbr.rel (%p320) target = $region28
        $region27: #{tpu_custom_call.1} parent=11 // pred_region
          _
        $region28: #{tpu_custom_call.1} parent=11 // pred_fallthru
          _
        // Predicated region
        $region29: #{tpu_custom_call.1} parent=11 // pred_check
          %p323 = pneg %p187
        $region30: #{tpu_custom_call.1} parent=11 // pred_check_branch
          %325 = sbr.rel (%p323) target = $region32
        $region31: #{tpu_custom_call.1} parent=11 // pred_region
          %s327 = ssub.s32 2048, 2048
          %328 = vsyncadd [#allocation9], %s327
          %s329 = sshll.u32 [#allocation8], 4
          %s330 = int_to_ptr.vmem [resolvable:$true] %s329
          %335 = dma.hbm_to_vmem [thread:$0]  %s6, 2048, %s330, [#allocation9], 128, 128, 8
        $region32: #{tpu_custom_call.1} parent=11 // pred_fallthru
          _
        // Predicated region
        $region33: #{tpu_custom_call.1} parent=11 // pred_check
          %p336 = pneg %p208
        $region34: #{tpu_custom_call.1} parent=11 // pred_check_branch
          %338 = sbr.rel (%p336) target = $region36
        $region35: #{tpu_custom_call.1} parent=11 // pred_region
          _
        $region36: #{tpu_custom_call.1} parent=11 // pred_fallthru
          _
      $region12: #{tpu_custom_call.1} parent=5 // pred_fallthru
        _
      %p339 = scmp.lt.s32.totalorder %s30, 2
      // Predicated region
      $region37: #{tpu_custom_call.1} parent=5 // pred_check
        %p340 = pneg %p339
      $region38: #{tpu_custom_call.1} parent=5 // pred_check_branch
        %342 = sbr.rel (%p340) target = $region40
      $region39: #{tpu_custom_call.1} parent=5 // pred_region
        // Predicated region
        $region41: #{tpu_custom_call.1} parent=39 // pred_check
          %p343 = pneg %p50
        $region42: #{tpu_custom_call.1} parent=39 // pred_check_branch
          %345 = sbr.rel (%p343) target = $region44
        $region43: #{tpu_custom_call.1} parent=39 // pred_region
          %s346 = sand.u32 %s40, 1
          %s347 = scalar_lea.sflag [#allocation3], %s346
          %s348 = sand.u32 %s40, 1
          %s349 = smul.addr %s348, 8
          %s350 = scalar_lea.vmem [#allocation2], %s349
          %s352 = ssub.s32 128, 128
          %353 = vsyncadd %s347, %s352
          %s354 = smul.addr %s30, 128
          %s355 = scalar_lea.hbm %s0, %s354
          %s357 = sshll.u32 %s350, 4
          %s358 = int_to_ptr.vmem [resolvable:$true] %s357
          %360 = dma.hbm_to_vmem [thread:$0]  %s355, 128, %s358, %s347
        $region44: #{tpu_custom_call.1} parent=39 // pred_fallthru
          _
        // Predicated region
        $region45: #{tpu_custom_call.1} parent=39 // pred_check
          %p361 = pneg %p76
        $region46: #{tpu_custom_call.1} parent=39 // pred_check_branch
          %363 = sbr.rel (%p361) target = $region48
        $region47: #{tpu_custom_call.1} parent=39 // pred_region
          %s364 = sand.u32 %s30, 1
          %s365 = scalar_lea.sflag [#allocation6], %s364
          %s366 = sand.u32 %s66, 1
          %s367 = smul.addr %s366, 8
          %s368 = scalar_lea.vmem [#allocation5], %s367
          %s370 = ssub.s32 128, 128
          %371 = vsyncadd %s365, %s370
          %s372 = smul.addr %s30, 128
          %s373 = scalar_lea.hbm %s1, %s372
          %s375 = sshll.u32 %s368, 4
          %s376 = int_to_ptr.vmem [resolvable:$true] %s375
          %378 = dma.hbm_to_vmem [thread:$0]  %s373, 128, %s376, %s365
        $region48: #{tpu_custom_call.1} parent=39 // pred_fallthru
          _
      $region40: #{tpu_custom_call.1} parent=5 // pred_fallthru
        _
      %p379 = scmp.le.s32.totalorder 1, %s30
      %p380 = scmp.lt.s32.totalorder %s30, 3
      %p381 = pnand %p379, %p380
      %p382 = pneg %p381
      // Predicated region
      $region49: #{tpu_custom_call.1} parent=5 // pred_check
        _
      $region50: #{tpu_custom_call.1} parent=5 // pred_check_branch
        %384 = sbr.rel (%p381) target = $region52
      $region51: #{tpu_custom_call.1} parent=5 // pred_region
        %s385 = ssub.s32 %s30, 1
        %s386 = sand.u32 %s43, 1
        %s387 = scalar_lea.sflag [#allocation3], %s386
        %s388 = sand.u32 %s43, 1
        %s389 = smul.addr %s388, 8
        %s390 = scalar_lea.vmem [#allocation2], %s389
        // Predicated region
        $region53: #{tpu_custom_call.1} parent=51 // pred_check
          %p391 = pneg %p56
        $region54: #{tpu_custom_call.1} parent=51 // pred_check_branch
          %393 = sbr.rel (%p391) target = $region56
        $region55: #{tpu_custom_call.1} parent=51 // pred_region
          %394 = dma.done %s387, 128
        $region56: #{tpu_custom_call.1} parent=51 // pred_fallthru
          _
        %s395 = sand.u32 %s35, 1
        %s396 = scalar_lea.sflag [#allocation6], %s395
        %s397 = sand.u32 %s69, 1
        %s398 = smul.addr %s397, 8
        %s399 = scalar_lea.vmem [#allocation5], %s398
        // Predicated region
        $region57: #{tpu_custom_call.1} parent=51 // pred_check
          %p400 = pneg %p82
        $region58: #{tpu_custom_call.1} parent=51 // pred_check_branch
          %402 = sbr.rel (%p400) target = $region60
        $region59: #{tpu_custom_call.1} parent=51 // pred_region
          %403 = dma.done %s396, 128
        $region60: #{tpu_custom_call.1} parent=51 // pred_fallthru
          _
        // Predicated region
        $region61: #{tpu_custom_call.1} parent=51 // pred_check
          %p404 = pneg %p145
        $region62: #{tpu_custom_call.1} parent=51 // pred_check_branch
          %406 = sbr.rel (%p404) target = $region64
        $region63: #{tpu_custom_call.1} parent=51 // pred_region
          %407 = dma.done [#allocation6], 2048
        $region64: #{tpu_custom_call.1} parent=51 // pred_fallthru
          _
        // Predicated region
        $region65: #{tpu_custom_call.1} parent=51 // pred_check
          %p408 = pneg %p187
        $region66: #{tpu_custom_call.1} parent=51 // pred_check_branch
          %410 = sbr.rel (%p408) target = $region68
        $region67: #{tpu_custom_call.1} parent=51 // pred_region
          %411 = dma.done [#allocation9], 2048
        $region68: #{tpu_custom_call.1} parent=51 // pred_fallthru
          _
        %s412 = sand.u32 %s43, 1
        %s413 = scalar_lea.sflag [#allocation3], %s412
        %s414 = sand.u32 %s43, 1
        %s415 = smul.addr %s414, 8
        %s416 = scalar_lea.vmem [#allocation2], %s415
        %p417 = pneg %p56
        %p418 = pneg %p53
        %s419 = sand.u32 %s35, 1
        %s420 = scalar_lea.sflag [#allocation6], %s419
        %s421 = sand.u32 %s69, 1
        %s422 = smul.addr %s421, 8
        %s423 = scalar_lea.vmem [#allocation5], %s422
        %p424 = pneg %p82
        %p425 = pneg %p79
        %p426 = pneg %p103
        %p427 = pneg %p100
        %p428 = pneg %p124
        %p429 = pneg %p121
        %p430 = pneg %p145
        %p431 = pneg %p142
        %p432 = pneg %p166
        %p433 = pneg %p163
        %p434 = pneg %p187
        %p435 = pneg %p184
        %p436 = pneg %p208
        %p437 = pneg %p205
        %p438 = pneg %p234
        %p439 = pneg %p231
        %s440 = sand.u32 %s221, 1
        %s441 = scalar_lea.sflag [#allocation4], %s440
        %s442 = sand.u32 %s221, 1
        %s443 = smul.addr %s442, 8
        %s444 = scalar_lea.vmem [#allocation10], %s443
        %p445 = pneg %p260
        %p446 = pneg %p257
        %s447 = sand.u32 %s35, 1
        %s448 = scalar_lea.sflag [#allocation12], %s447
        %s449 = sand.u32 %s247, 1
        %s450 = smul.addr %s449, 8
        %s451 = scalar_lea.vmem [#allocation11], %s450
        %p452 = pneg %p286
        %p453 = pneg %p283
        %s454 = sand.u32 %s35, 1
        %s455 = scalar_lea.sflag [#allocation12], %s454
        %s456 = sand.u32 %s273, 1
        %s457 = smul.addr %s456, 8
        %s458 = scalar_lea.vmem [#allocation13], %s457
        %v459 = vld [vmem:[%s390] sm:$0xff]
        %460 = vadd.xlane.f32.xlu0 %v459
        %v461 = vpop.xlane.xlu0 %460
        %v462 = vrcp.pop 128.0
        %v463 = vmul.f32 %v461, %v462
        %v464 = vsub.f32 %v459, %v463
        %v465 = vmul.f32 %v464, %v464
        %466 = vadd.xlane.f32.xlu0 %v465
        %v467 = vpop.xlane.xlu0 %466
        %v468 = vmul.f32 %v467, %v462
        %v469 = vadd.f32 %v468, 1e-05
        %v470 = vrsqrt.pop %v469
        %v471 = vmul.f32 %v464, %v470
        %v472 = vld [vmem:[%s2] sm:$0x1]
        %v474 = vlaneseq
        %v475 = vshrl.u32 %v474, 7
        %v476 = vsub.s32 0, %v475
        %v477 = vrot.slane %v472, %v476
        %v479 = vmul.f32 %v471, %v477
        %v480 = vld [vmem:[%s3] sm:$0x1]
        %v482 = vlaneseq
        %v483 = vshrl.u32 %v482, 7
        %v484 = vsub.s32 0, %v483
        %v485 = vrot.slane %v480, %v484
        %v487 = vadd.f32 %v479, %v485
        %v488 = vld [vmem:[#allocation7] sm:$0xff]
        %v489 = vld [vmem:[#allocation7 + $0x8] sm:$0xff]
        %v490 = vld [vmem:[#allocation7 + $0x10] sm:$0xff]
        %v491 = vld [vmem:[#allocation7 + $0x18] sm:$0xff]
        %v492 = vld [vmem:[#allocation7 + $0x20] sm:$0xff]
        %v493 = vld [vmem:[#allocation7 + $0x28] sm:$0xff]
        %v494 = vld [vmem:[#allocation7 + $0x30] sm:$0xff]
        %v495 = vld [vmem:[#allocation7 + $0x38] sm:$0xff]
        %v496 = vld [vmem:[#allocation7 + $0x40] sm:$0xff]
        %v497 = vld [vmem:[#allocation7 + $0x48] sm:$0xff]
        %v498 = vld [vmem:[#allocation7 + $0x50] sm:$0xff]
        %v499 = vld [vmem:[#allocation7 + $0x58] sm:$0xff]
        %v500 = vld [vmem:[#allocation7 + $0x60] sm:$0xff]
        %v501 = vld [vmem:[#allocation7 + $0x68] sm:$0xff]
        %v502 = vld [vmem:[#allocation7 + $0x70] sm:$0xff]
        %v503 = vld [vmem:[#allocation7 + $0x78] sm:$0xff]
        %v504 = vld [vmem:[%s5] sm:$0x1]
        %v506 = vlaneseq
        %v507 = vshrl.u32 %v506, 7
        %v508 = vsub.s32 0, %v507
        %v509 = vrot.slane %v504, %v508
        %511 = vmatprep.subr.mxu0 0.0
        %512 = vmatpush1.msra.mxu0 %v503
        %513 = vmatprep.subr.mxu0 0.0
        %514 = vmatpush1.msra.mxu0 %v502
        %515 = vmatprep.subr.mxu0 0.0
        %516 = vmatpush1.msra.mxu0 %v501
        %517 = vmatprep.subr.mxu0 0.0
        %518 = vmatpush1.msra.mxu0 %v500
        %519 = vmatprep.subr.mxu0 0.0
        %520 = vmatpush1.msra.mxu0 %v499
        %521 = vmatprep.subr.mxu0 0.0
        %522 = vmatpush1.msra.mxu0 %v498
        %523 = vmatprep.subr.mxu0 0.0
        %524 = vmatpush1.msra.mxu0 %v497
        %525 = vmatprep.subr.mxu0 0.0
        %526 = vmatpush1.msra.mxu0 %v496
        %527 = vmatprep.subr.mxu0 0.0
        %528 = vmatpush1.msra.mxu0 %v495
        %529 = vmatprep.subr.mxu0 0.0
        %530 = vmatpush1.msra.mxu0 %v494
        %531 = vmatprep.subr.mxu0 0.0
        %532 = vmatpush1.msra.mxu0 %v493
        %533 = vmatprep.subr.mxu0 0.0
        %534 = vmatpush1.msra.mxu0 %v492
        %535 = vmatprep.subr.mxu0 0.0
        %536 = vmatpush1.msra.mxu0 %v491
        %537 = vmatprep.subr.mxu0 0.0
        %538 = vmatpush1.msra.mxu0 %v490
        %539 = vmatprep.subr.mxu0 0.0
        %540 = vmatpush1.msra.mxu0 %v489
        %541 = vmatprep.subr.mxu0 0.0
        %542 = vmatpush1.msra.mxu0 %v488
        %543 = vmatprep.subr.mxu0 0.0
        %544 = vmatpush2.msra.mxu0 0.0
        %545 = vmatprep.subr.mxu0 0.0
        %546 = vmatpush2.msra.mxu0 0.0
        %547 = vmatprep.subr.mxu0 0.0
        %548 = vmatpush2.msra.mxu0 0.0
        %549 = vmatprep.subr.mxu0 0.0
        %550 = vmatpush2.msra.mxu0 0.0
        %551 = vmatprep.subr.mxu0 0.0
        %552 = vmatpush2.msra.mxu0 0.0
        %553 = vmatprep.subr.mxu0 0.0
        %554 = vmatpush2.msra.mxu0 0.0
        %555 = vmatprep.subr.mxu0 0.0
        %556 = vmatpush2.msra.mxu0 0.0
        %557 = vmatprep.subr.mxu0 0.0
        %558 = vmatpush2.msra.mxu0 0.0
        %559 = vmatprep.subr.mxu0 0.0
        %560 = vmatpush2.msra.mxu0 0.0
        %561 = vmatprep.subr.mxu0 0.0
        %562 = vmatpush2.msra.mxu0 0.0
        %563 = vmatprep.subr.mxu0 0.0
        %564 = vmatpush2.msra.mxu0 0.0
        %565 = vmatprep.subr.mxu0 0.0
        %566 = vmatpush2.msra.mxu0 0.0
        %567 = vmatprep.subr.mxu0 0.0
        %568 = vmatpush2.msra.mxu0 0.0
        %569 = vmatprep.subr.mxu0 0.0
        %570 = vmatpush2.msra.mxu0 0.0
        %571 = vmatprep.subr.mxu0 0.0
        %572 = vmatpush2.msra.mxu0 0.0
        %573 = vmatprep.subr.mxu0 0.0
        %574 = vmatpush2.msra.mxu0 0.0
        %575 = vmatprep.mubr.f32.mxu0 0.0
        %576 = vmatmul.mubr.f32.gmra.mxu0 %v487
        %v577 = vpop.f32.mrf.mxu0
        %v578 = vadd.f32 %v509, %v577
        %v579 = vpop.f32.mrf.mxu0
        %580 = vdwg.mxu0
        %v581 = vmax.f32 %v578, 0.0
        %v582 = vld [vmem:[#allocation8] sm:$0xff]
        %v583 = vld [vmem:[#allocation8 + $0x8] sm:$0xff]
        %v584 = vld [vmem:[#allocation8 + $0x10] sm:$0xff]
        %v585 = vld [vmem:[#allocation8 + $0x18] sm:$0xff]
        %v586 = vld [vmem:[#allocation8 + $0x20] sm:$0xff]
        %v587 = vld [vmem:[#allocation8 + $0x28] sm:$0xff]
        %v588 = vld [vmem:[#allocation8 + $0x30] sm:$0xff]
        %v589 = vld [vmem:[#allocation8 + $0x38] sm:$0xff]
        %v590 = vld [vmem:[#allocation8 + $0x40] sm:$0xff]
        %v591 = vld [vmem:[#allocation8 + $0x48] sm:$0xff]
        %v592 = vld [vmem:[#allocation8 + $0x50] sm:$0xff]
        %v593 = vld [vmem:[#allocation8 + $0x58] sm:$0xff]
        %v594 = vld [vmem:[#allocation8 + $0x60] sm:$0xff]
        %v595 = vld [vmem:[#allocation8 + $0x68] sm:$0xff]
        %v596 = vld [vmem:[#allocation8 + $0x70] sm:$0xff]
        %v597 = vld [vmem:[#allocation8 + $0x78] sm:$0xff]
        %v598 = vld [vmem:[%s7] sm:$0x1]
        %v600 = vlaneseq
        %v601 = vshrl.u32 %v600, 7
        %v602 = vsub.s32 0, %v601
        %v603 = vrot.slane %v598, %v602
        %605 = vmatprep.subr.mxu0 0.0
        %606 = vmatpush1.msra.mxu0 %v597
        %607 = vmatprep.subr.mxu0 0.0
        %608 = vmatpush1.msra.mxu0 %v596
        %609 = vmatprep.subr.mxu0 0.0
        %610 = vmatpush1.msra.mxu0 %v595
        %611 = vmatprep.subr.mxu0 0.0
        %612 = vmatpush1.msra.mxu0 %v594
        %613 = vmatprep.subr.mxu0 0.0
        %614 = vmatpush1.msra.mxu0 %v593
        %615 = vmatprep.subr.mxu0 0.0
        %616 = vmatpush1.msra.mxu0 %v592
        %617 = vmatprep.subr.mxu0 0.0
        %618 = vmatpush1.msra.mxu0 %v591
        %619 = vmatprep.subr.mxu0 0.0
        %620 = vmatpush1.msra.mxu0 %v590
        %621 = vmatprep.subr.mxu0 0.0
        %622 = vmatpush1.msra.mxu0 %v589
        %623 = vmatprep.subr.mxu0 0.0
        %624 = vmatpush1.msra.mxu0 %v588
        %625 = vmatprep.subr.mxu0 0.0
        %626 = vmatpush1.msra.mxu0 %v587
        %627 = vmatprep.subr.mxu0 0.0
        %628 = vmatpush1.msra.mxu0 %v586
        %629 = vmatprep.subr.mxu0 0.0
        %630 = vmatpush1.msra.mxu0 %v585
        %631 = vmatprep.subr.mxu0 0.0
        %632 = vmatpush1.msra.mxu0 %v584
        %633 = vmatprep.subr.mxu0 0.0
        %634 = vmatpush1.msra.mxu0 %v583
        %635 = vmatprep.subr.mxu0 0.0
        %636 = vmatpush1.msra.mxu0 %v582
        %637 = vmatprep.subr.mxu0 0.0
        %638 = vmatpush2.msra.mxu0 0.0
        %639 = vmatprep.subr.mxu0 0.0
        %640 = vmatpush2.msra.mxu0 0.0
        %641 = vmatprep.subr.mxu0 0.0
        %642 = vmatpush2.msra.mxu0 0.0
        %643 = vmatprep.subr.mxu0 0.0
        %644 = vmatpush2.msra.mxu0 0.0
        %645 = vmatprep.subr.mxu0 0.0
        %646 = vmatpush2.msra.mxu0 0.0
        %647 = vmatprep.subr.mxu0 0.0
        %648 = vmatpush2.msra.mxu0 0.0
        %649 = vmatprep.subr.mxu0 0.0
        %650 = vmatpush2.msra.mxu0 0.0
        %651 = vmatprep.subr.mxu0 0.0
        %652 = vmatpush2.msra.mxu0 0.0
        %653 = vmatprep.subr.mxu0 0.0
        %654 = vmatpush2.msra.mxu0 0.0
        %655 = vmatprep.subr.mxu0 0.0
        %656 = vmatpush2.msra.mxu0 0.0
        %657 = vmatprep.subr.mxu0 0.0
        %658 = vmatpush2.msra.mxu0 0.0
        %659 = vmatprep.subr.mxu0 0.0
        %660 = vmatpush2.msra.mxu0 0.0
        %661 = vmatprep.subr.mxu0 0.0
        %662 = vmatpush2.msra.mxu0 0.0
        %663 = vmatprep.subr.mxu0 0.0
        %664 = vmatpush2.msra.mxu0 0.0
        %665 = vmatprep.subr.mxu0 0.0
        %666 = vmatpush2.msra.mxu0 0.0
        %667 = vmatprep.subr.mxu0 0.0
        %668 = vmatpush2.msra.mxu0 0.0
        %669 = vmatprep.mubr.f32.mxu0 0.0
        %670 = vmatmul.mubr.f32.gmra.mxu0 %v581
        %v671 = vpop.f32.mrf.mxu0
        %v672 = vadd.f32 %v603, %v671
        %v673 = vpop.f32.mrf.mxu0
        %674 = vdwg.mxu0
        %v675 = vld [vmem:[%s399] sm:$0xff]
        %v676 = vadd.f32 %v672, %v675
        %677 = vst [vmem:[%s444] sm:$0xff] %v676
        %678 = vst [vmem:[%s451] sm:$0xff] %v581
        %679 = vst [vmem:[%s458] sm:$0xff] %v672
        %s680 = sand.u32 %s221, 1
        %s681 = scalar_lea.sflag [#allocation4], %s680
        %s682 = sand.u32 %s221, 1
        %s683 = smul.addr %s682, 8
        %s684 = scalar_lea.vmem [#allocation10], %s683
        %s685 = sand.u32 %s35, 1
        %s686 = scalar_lea.sflag [#allocation12], %s685
        %s687 = sand.u32 %s247, 1
        %s688 = smul.addr %s687, 8
        %s689 = scalar_lea.vmem [#allocation11], %s688
        %s690 = sand.u32 %s35, 1
        %s691 = scalar_lea.sflag [#allocation12], %s690
        %s692 = sand.u32 %s273, 1
        %s693 = smul.addr %s692, 8
        %s694 = scalar_lea.vmem [#allocation13], %s693
        // Predicated region
        $region69: #{tpu_custom_call.1} parent=51 // pred_check
          %p695 = pneg %p231
        $region70: #{tpu_custom_call.1} parent=51 // pred_check_branch
          %697 = sbr.rel (%p695) target = $region72
        $region71: #{tpu_custom_call.1} parent=51 // pred_region
          %s699 = ssub.s32 128, 128
          %700 = vsyncadd %s681, %s699
          %s701 = smul.addr %s35, 128
          %s702 = scalar_lea.hbm %s8, %s701
          %s704 = sshll.u32 %s684, 4
          %s705 = int_to_ptr.vmem [resolvable:$true] %s704
          %707 = dma.vmem_to_hbm [thread:$0]  %s705, 128, %s702, %s681
        $region72: #{tpu_custom_call.1} parent=51 // pred_fallthru
          _
        // Predicated region
        $region73: #{tpu_custom_call.1} parent=51 // pred_check
          %p708 = pneg %p257
        $region74: #{tpu_custom_call.1} parent=51 // pred_check_branch
          %710 = sbr.rel (%p708) target = $region76
        $region75: #{tpu_custom_call.1} parent=51 // pred_region
          %s712 = ssub.s32 128, 128
          %713 = vsyncadd %s686, %s712
          %s714 = smul.addr %s35, 128
          %s715 = scalar_lea.hbm %s9, %s714
          %s717 = sshll.u32 %s689, 4
          %s718 = int_to_ptr.vmem [resolvable:$true] %s717
          %720 = dma.vmem_to_hbm [thread:$0]  %s718, 128, %s715, %s686
        $region76: #{tpu_custom_call.1} parent=51 // pred_fallthru
          _
        // Predicated region
        $region77: #{tpu_custom_call.1} parent=51 // pred_check
          %p721 = pneg %p283
        $region78: #{tpu_custom_call.1} parent=51 // pred_check_branch
          %723 = sbr.rel (%p721) target = $region80
        $region79: #{tpu_custom_call.1} parent=51 // pred_region
          %s725 = ssub.s32 128, 128
          %726 = vsyncadd %s691, %s725
          %s727 = smul.addr %s35, 128
          %s728 = scalar_lea.hbm %s10, %s727
          %s730 = sshll.u32 %s694, 4
          %s731 = int_to_ptr.vmem [resolvable:$true] %s730
          %733 = dma.vmem_to_hbm [thread:$0]  %s731, 128, %s728, %s691
        $region80: #{tpu_custom_call.1} parent=51 // pred_fallthru
          _
      $region52: #{tpu_custom_call.1} parent=5 // pred_fallthru
        _
      %p734 = scmp.le.s32.totalorder 2, %s30
      // Predicated region
      $region81: #{tpu_custom_call.1} parent=5 // pred_check
        %p735 = pneg %p734
      $region82: #{tpu_custom_call.1} parent=5 // pred_check_branch
        %737 = sbr.rel (%p735) target = $region84
      $region83: #{tpu_custom_call.1} parent=5 // pred_region
        %s738 = ssub.s32 %s30, 2
        // Predicated region
        $region85: #{tpu_custom_call.1} parent=83 // pred_check
          %p739 = pneg %p237
        $region86: #{tpu_custom_call.1} parent=83 // pred_check_branch
          %741 = sbr.rel (%p739) target = $region88
        $region87: #{tpu_custom_call.1} parent=83 // pred_region
          %s742 = sand.u32 %s222, 1
          %s743 = scalar_lea.sflag [#allocation4], %s742
          %s744 = sand.u32 %s222, 1
          %s745 = smul.addr %s744, 8
          %s746 = scalar_lea.vmem [#allocation10], %s745
          %747 = dma.done %s743, 128
        $region88: #{tpu_custom_call.1} parent=83 // pred_fallthru
          _
        // Predicated region
        $region89: #{tpu_custom_call.1} parent=83 // pred_check
          %p748 = pneg %p263
        $region90: #{tpu_custom_call.1} parent=83 // pred_check_branch
          %750 = sbr.rel (%p748) target = $region92
        $region91: #{tpu_custom_call.1} parent=83 // pred_region
          %s751 = sand.u32 %s36, 1
          %s752 = scalar_lea.sflag [#allocation12], %s751
          %s753 = sand.u32 %s248, 1
          %s754 = smul.addr %s753, 8
          %s755 = scalar_lea.vmem [#allocation11], %s754
          %756 = dma.done %s752, 128
        $region92: #{tpu_custom_call.1} parent=83 // pred_fallthru
          _
        // Predicated region
        $region93: #{tpu_custom_call.1} parent=83 // pred_check
          %p757 = pneg %p289
        $region94: #{tpu_custom_call.1} parent=83 // pred_check_branch
          %759 = sbr.rel (%p757) target = $region96
        $region95: #{tpu_custom_call.1} parent=83 // pred_region
          %s760 = sand.u32 %s36, 1
          %s761 = scalar_lea.sflag [#allocation12], %s760
          %s762 = sand.u32 %s274, 1
          %s763 = smul.addr %s762, 8
          %s764 = scalar_lea.vmem [#allocation13], %s763
          %765 = dma.done %s761, 128
        $region96: #{tpu_custom_call.1} parent=83 // pred_fallthru
          _
      $region84: #{tpu_custom_call.1} parent=5 // pred_fallthru
        _
    $region6: #{tpu_custom_call.1} parent=1 // loop_footer
      %s34 = sadd.s32 1, %s30
    $region7: #{tpu_custom_call.1} parent=1 // loop_footer_branch
      %29 = sbr.rel target = $region3
    $region8: #{tpu_custom_call.1} parent=1 // loop_exit
      _
    %766 = vsyncpa [#allocation3], 1
    %s767 = scalar_lea.sflag [#allocation3], 1
    %768 = vsyncpa %s767, 1
    %769 = vsyncpa [#allocation6], 1
    %s770 = scalar_lea.sflag [#allocation6], 1
    %771 = vsyncpa %s770, 1
    %772 = vsyncpa [#allocation9], 1
    %773 = vsyncpa [#allocation4], 1
    %s774 = scalar_lea.sflag [#allocation4], 1
    %775 = vsyncpa %s774, 1
    %776 = vsyncpa [#allocation12], 1
    %s777 = scalar_lea.sflag [#allocation12], 1
    %778 = vsyncpa %s777, 1

// kernel: tpu_custom_call.1
$region0: #{tpu_custom_call.1}
  #allocation0 [shape = 'u32[]', space=smem, size = 0x4, offset = 0x4, fixed_abs, tag = 'smem constant byte address 0x4 - core index']
  #allocation1 [shape = 'u32[144,128]{1,0:T(1,128)}', space=vmem, size = 0x12000, scoped, tag = 'internal scratch']
  %s0 = inlined_call_operand.hbm [shape: f32[16,128], index: 0, kind: input, shape index: {}]
  %s1 = inlined_call_operand.hbm [shape: f32[16,128], index: 1, kind: input, shape index: {}]
  %s2 = inlined_call_operand.vmem [shape: f32[1,128], index: 2, kind: input, shape index: {}]
  %s3 = inlined_call_operand.vmem [shape: f32[1,128], index: 3, kind: input, shape index: {}]
  %s4 = inlined_call_operand.hbm [shape: f32[128,128], index: 4, kind: input, shape index: {}]
  %s5 = inlined_call_operand.vmem [shape: f32[1,128], index: 5, kind: input, shape index: {}]
  %s6 = inlined_call_operand.hbm [shape: f32[128,128], index: 6, kind: input, shape index: {}]
  %s7 = inlined_call_operand.vmem [shape: f32[1,128], index: 7, kind: input, shape index: {}]
  %s8 = inlined_call_operand.hbm [shape: f32[16,128], index: 8, kind: output, shape index: {0}]
  %s9 = inlined_call_operand.hbm [shape: f32[16,128], index: 9, kind: output, shape index: {1}]
  %s10 = inlined_call_operand.hbm [shape: f32[16,128], index: 10, kind: output, shape index: {2}]
  %11 = xla_tuple %s8, %s9, %s10
  %s12 = sld [smem:[#allocation0]]
  $region97: #{tpu_custom_call.1} parent=0
    _
  %s14 = ssub.s32 1, %s12
  %s15 = scalar_select 0, %s14, %s12
  $region1: #{tpu_custom_call.1} parent=0
    #allocation2 [shape = 'u8[8192]{0}', space=vmem, size = 0x2000, scoped, tag = 'input window, operand 0']
    #allocation3 [shape = 's32[2]{0}', space=sflag, size = 0x8, scoped, tag = 'scoped memory for tpu_custom_call.1']
    #allocation4 [shape = 's32[2]{0}', space=sflag, size = 0x8, scoped, tag = 'scoped memory for tpu_custom_call.1']
    #allocation5 [shape = 'u8[8192]{0}', space=vmem, size = 0x2000, scoped, tag = 'input window, operand 1']
    #allocation6 [shape = 's32[2]{0}', space=sflag, size = 0x8, scoped, tag = 'scoped memory for tpu_custom_call.1']
    #allocation7 [shape = 'u8[65536]{0}', space=vmem, size = 0x10000, scoped, tag = 'input window, operand 4, single buffered']
    #allocation8 [shape = 'u8[65536]{0}', space=vmem, size = 0x10000, scoped, tag = 'input window, operand 6, single buffered']
    #allocation9 [shape = 's32[1]{0}', space=sflag, size = 0x4, scoped, tag = 'scoped memory for tpu_custom_call.1']
    #allocation10 [shape = 'u8[8192]{0}', space=vmem, size = 0x2000, scoped, tag = 'output window, operand 0']
    #allocation11 [shape = 'u8[8192]{0}', space=vmem, size = 0x2000, scoped, tag = 'output window, operand 1']
    #allocation12 [shape = 's32[2]{0}', space=sflag, size = 0x8, scoped, tag = 'scoped memory for tpu_custom_call.1']
    #allocation13 [shape = 'u8[8192]{0}', space=vmem, size = 0x2000, scoped, tag = 'output window, operand 2']
    %16 = vsyncpa [#allocation3], 0
    %s17 = scalar_lea.sflag [#allocation3], 1
    %18 = vsyncpa %s17, 0
    %19 = vsyncpa [#allocation6], 0
    %s20 = scalar_lea.sflag [#allocation6], 1
    %21 = vsyncpa %s20, 0
    %22 = vsyncpa [#allocation9], 0
    %23 = vsyncpa [#allocation4], 0
    %s24 = scalar_lea.sflag [#allocation4], 1
    %25 = vsyncpa %s24, 0
    %26 = vsyncpa [#allocation12], 0
    %s27 = scalar_lea.sflag [#allocation12], 1
    %28 = vsyncpa %s27, 0
    loop: start=0, step=1, limit=4
    $region2: #{tpu_custom_call.1} parent=1 // loop_pre_header
      _
    $region3: #{tpu_custom_call.1} parent=1 // loop_header
      %s30 = sphi 0, %s34
      %p31 = scmp.ge.s32.totalorder %s30, 4
      %s40 = sphi 0, %s42
      %s43 = sphi 0, %s40
      %s44 = sphi 0, %s43
      %s60 = sphi 0, %s44
      %s66 = sphi 0, %s68
      %s69 = sphi 0, %s66
      %s70 = sphi 0, %s69
      %s86 = sphi 0, %s70
      %s90 = sphi 0, %s90
      %s92 = sphi 0, %s90
      %s93 = sphi 0, %s92
      %s107 = sphi 0, %s93
      %s111 = sphi 0, %s111
      %s113 = sphi 0, %s111
      %s114 = sphi 0, %s113
      %s128 = sphi 0, %s114
      %s132 = sphi 0, %s132
      %s134 = sphi 0, %s132
      %s135 = sphi 0, %s134
      %s149 = sphi 0, %s135
      %s153 = sphi 0, %s153
      %s155 = sphi 0, %s153
      %s156 = sphi 0, %s155
      %s170 = sphi 0, %s156
      %s174 = sphi 0, %s174
      %s176 = sphi 0, %s174
      %s177 = sphi 0, %s176
      %s191 = sphi 0, %s177
      %s195 = sphi 0, %s195
      %s197 = sphi 0, %s195
      %s198 = sphi 0, %s197
      %s212 = sphi 0, %s198
      %s218 = sphi 0, %s220
      %s221 = sphi 0, %s218
      %s222 = sphi 0, %s221
      %s238 = sphi 0, %s222
      %s244 = sphi 0, %s246
      %s247 = sphi 0, %s244
      %s248 = sphi 0, %s247
      %s264 = sphi 0, %s248
      %s270 = sphi 0, %s272
      %s273 = sphi 0, %s270
      %s274 = sphi 0, %s273
      %s290 = sphi 0, %s274
    $region4: #{tpu_custom_call.1} parent=1 // loop_header_branch
      %33 = sbr.rel (%p31) target = $region8
    $region5: #{tpu_custom_call.1} parent=1 // loop_body
      %s35 = ssub.s32 %s30, 1
      %s36 = ssub.s32 %s30, 2
      %s37 = sadd.s32 %s30, 1
      %s38 = ssub.s32 %s30, %s37
      %p39 = scmp.eq.s32.totalorder %s38, 0
      %s41 = sadd.s32 %s40, 1
      %s42 = scalar_select %p39, %s40, %s41
      %p45 = pneg %p39
      %p46 = scmp.eq.s32.totalorder %s30, 1
      %p47 = por %p45, %p46
      %p48 = scmp.ne.s32.totalorder %s40, %s43
      %p49 = scmp.eq.s32.totalorder %s30, 0
      %p50 = por %p48, %p49
      %p51 = scmp.ne.s32.totalorder %s40, %s43
      %p52 = scmp.eq.s32.totalorder %s35, 1
      %p53 = por %p51, %p52
      %p54 = scmp.ne.s32.totalorder %s43, %s44
      %p55 = scmp.eq.s32.totalorder %s35, 0
      %p56 = por %p54, %p55
      %p57 = scmp.ne.s32.totalorder %s43, %s44
      %p58 = scmp.eq.s32.totalorder %s36, 1
      %p59 = por %p57, %p58
      %p61 = scmp.ne.s32.totalorder %s44, %s60
      %p62 = scmp.eq.s32.totalorder %s36, 0
      %p63 = por %p61, %p62
      %s64 = ssub.s32 %s30, %s37
      %p65 = scmp.eq.s32.totalorder %s64, 0
      %s67 = sadd.s32 %s66, 1
      %s68 = scalar_select %p65, %s66, %s67
      %p71 = pneg %p65
      %p72 = scmp.eq.s32.totalorder %s30, 1
      %p73 = por %p71, %p72
      %p74 = scmp.ne.s32.totalorder %s66, %s69
      %p75 = scmp.eq.s32.totalorder %s30, 0
      %p76 = por %p74, %p75
      %p77 = scmp.ne.s32.totalorder %s66, %s69
      %p78 = scmp.eq.s32.totalorder %s35, 1
      %p79 = por %p77, %p78
      %p80 = scmp.ne.s32.totalorder %s69, %s70
      %p81 = scmp.eq.s32.totalorder %s35, 0
      %p82 = por %p80, %p81
      %p83 = scmp.ne.s32.totalorder %s69, %s70
      %p84 = scmp.eq.s32.totalorder %s36, 1
      %p85 = por %p83, %p84
      %p87 = scmp.ne.s32.totalorder %s70, %s86
      %p88 = scmp.eq.s32.totalorder %s36, 0
      %p89 = por %p87, %p88
      %s91 = sadd.s32 %s90, 1
      %p94 = scmp.eq.s32.totalorder %s30, 1
      %p95 = scmp.ne.s32.totalorder %s90, %s92
      %p96 = scmp.eq.s32.totalorder %s30, 0
      %p97 = por %p95, %p96
      %p98 = scmp.ne.s32.totalorder %s90, %s92
      %p99 = scmp.eq.s32.totalorder %s35, 1
      %p100 = por %p98, %p99
      %p101 = scmp.ne.s32.totalorder %s92, %s93
      %p102 = scmp.eq.s32.totalorder %s35, 0
      %p103 = por %p101, %p102
      %p104 = scmp.ne.s32.totalorder %s92, %s93
      %p105 = scmp.eq.s32.totalorder %s36, 1
      %p106 = por %p104, %p105
      %p108 = scmp.ne.s32.totalorder %s93, %s107
      %p109 = scmp.eq.s32.totalorder %s36, 0
      %p110 = por %p108, %p109
      %s112 = sadd.s32 %s111, 1
      %p115 = scmp.eq.s32.totalorder %s30, 1
      %p116 = scmp.ne.s32.totalorder %s111, %s113
      %p117 = scmp.eq.s32.totalorder %s30, 0
      %p118 = por %p116, %p117
      %p119 = scmp.ne.s32.totalorder %s111, %s113
      %p120 = scmp.eq.s32.totalorder %s35, 1
      %p121 = por %p119, %p120
      %p122 = scmp.ne.s32.totalorder %s113, %s114
      %p123 = scmp.eq.s32.totalorder %s35, 0
      %p124 = por %p122, %p123
      %p125 = scmp.ne.s32.totalorder %s113, %s114
      %p126 = scmp.eq.s32.totalorder %s36, 1
      %p127 = por %p125, %p126
      %p129 = scmp.ne.s32.totalorder %s114, %s128
      %p130 = scmp.eq.s32.totalorder %s36, 0
      %p131 = por %p129, %p130
      %s133 = sadd.s32 %s132, 1
      %p136 = scmp.eq.s32.totalorder %s30, 1
      %p137 = scmp.ne.s32.totalorder %s132, %s134
      %p138 = scmp.eq.s32.totalorder %s30, 0
      %p139 = por %p137, %p138
      %p140 = scmp.ne.s32.totalorder %s132, %s134
      %p141 = scmp.eq.s32.totalorder %s35, 1
      %p142 = por %p140, %p141
      %p143 = scmp.ne.s32.totalorder %s134, %s135
      %p144 = scmp.eq.s32.totalorder %s35, 0
      %p145 = por %p143, %p144
      %p146 = scmp.ne.s32.totalorder %s134, %s135
      %p147 = scmp.eq.s32.totalorder %s36, 1
      %p148 = por %p146, %p147
      %p150 = scmp.ne.s32.totalorder %s135, %s149
      %p151 = scmp.eq.s32.totalorder %s36, 0
      %p152 = por %p150, %p151
      %s154 = sadd.s32 %s153, 1
      %p157 = scmp.eq.s32.totalorder %s30, 1
      %p158 = scmp.ne.s32.totalorder %s153, %s155
      %p159 = scmp.eq.s32.totalorder %s30, 0
      %p160 = por %p158, %p159
      %p161 = scmp.ne.s32.totalorder %s153, %s155
      %p162 = scmp.eq.s32.totalorder %s35, 1
      %p163 = por %p161, %p162
      %p164 = scmp.ne.s32.totalorder %s155, %s156
      %p165 = scmp.eq.s32.totalorder %s35, 0
      %p166 = por %p164, %p165
      %p167 = scmp.ne.s32.totalorder %s155, %s156
      %p168 = scmp.eq.s32.totalorder %s36, 1
      %p169 = por %p167, %p168
      %p171 = scmp.ne.s32.totalorder %s156, %s170
      %p172 = scmp.eq.s32.totalorder %s36, 0
      %p173 = por %p171, %p172
      %s175 = sadd.s32 %s174, 1
      %p178 = scmp.eq.s32.totalorder %s30, 1
      %p179 = scmp.ne.s32.totalorder %s174, %s176
      %p180 = scmp.eq.s32.totalorder %s30, 0
      %p181 = por %p179, %p180
      %p182 = scmp.ne.s32.totalorder %s174, %s176
      %p183 = scmp.eq.s32.totalorder %s35, 1
      %p184 = por %p182, %p183
      %p185 = scmp.ne.s32.totalorder %s176, %s177
      %p186 = scmp.eq.s32.totalorder %s35, 0
      %p187 = por %p185, %p186
      %p188 = scmp.ne.s32.totalorder %s176, %s177
      %p189 = scmp.eq.s32.totalorder %s36, 1
      %p190 = por %p188, %p189
      %p192 = scmp.ne.s32.totalorder %s177, %s191
      %p193 = scmp.eq.s32.totalorder %s36, 0
      %p194 = por %p192, %p193
      %s196 = sadd.s32 %s195, 1
      %p199 = scmp.eq.s32.totalorder %s30, 1
      %p200 = scmp.ne.s32.totalorder %s195, %s197
      %p201 = scmp.eq.s32.totalorder %s30, 0
      %p202 = por %p200, %p201
      %p203 = scmp.ne.s32.totalorder %s195, %s197
      %p204 = scmp.eq.s32.totalorder %s35, 1
      %p205 = por %p203, %p204
      %p206 = scmp.ne.s32.totalorder %s197, %s198
      %p207 = scmp.eq.s32.totalorder %s35, 0
      %p208 = por %p206, %p207
      %p209 = scmp.ne.s32.totalorder %s197, %s198
      %p210 = scmp.eq.s32.totalorder %s36, 1
      %p211 = por %p209, %p210
      %p213 = scmp.ne.s32.totalorder %s198, %s212
      %p214 = scmp.eq.s32.totalorder %s36, 0
      %p215 = por %p213, %p214
      %s216 = ssub.s32 %s30, %s37
      %p217 = scmp.eq.s32.totalorder %s216, 0
      %s219 = sadd.s32 %s218, 1
      %s220 = scalar_select %p217, %s218, %s219
      %p223 = pneg %p217
      %p224 = scmp.eq.s32.totalorder %s30, 1
      %p225 = por %p223, %p224
      %p226 = scmp.ne.s32.totalorder %s218, %s221
      %p227 = scmp.eq.s32.totalorder %s30, 0
      %p228 = por %p226, %p227
      %p229 = scmp.ne.s32.totalorder %s218, %s221
      %p230 = scmp.eq.s32.totalorder %s35, 1
      %p231 = por %p229, %p230
      %p232 = scmp.ne.s32.totalorder %s221, %s222
      %p233 = scmp.eq.s32.totalorder %s35, 0
      %p234 = por %p232, %p233
      %p235 = scmp.ne.s32.totalorder %s221, %s222
      %p236 = scmp.eq.s32.totalorder %s36, 1
      %p237 = por %p235, %p236
      %p239 = scmp.ne.s32.totalorder %s222, %s238
      %p240 = scmp.eq.s32.totalorder %s36, 0
      %p241 = por %p239, %p240
      %s242 = ssub.s32 %s30, %s37
      %p243 = scmp.eq.s32.totalorder %s242, 0
      %s245 = sadd.s32 %s244, 1
      %s246 = scalar_select %p243, %s244, %s245
      %p249 = pneg %p243
      %p250 = scmp.eq.s32.totalorder %s30, 1
      %p251 = por %p249, %p250
      %p252 = scmp.ne.s32.totalorder %s244, %s247
      %p253 = scmp.eq.s32.totalorder %s30, 0
      %p254 = por %p252, %p253
      %p255 = scmp.ne.s32.totalorder %s244, %s247
      %p256 = scmp.eq.s32.totalorder %s35, 1
      %p257 = por %p255, %p256
      %p258 = scmp.ne.s32.totalorder %s247, %s248
      %p259 = scmp.eq.s32.totalorder %s35, 0
      %p260 = por %p258, %p259
      %p261 = scmp.ne.s32.totalorder %s247, %s248
      %p262 = scmp.eq.s32.totalorder %s36, 1
      %p263 = por %p261, %p262
      %p265 = scmp.ne.s32.totalorder %s248, %s264
      %p266 = scmp.eq.s32.totalorder %s36, 0
      %p267 = por %p265, %p266
      %s268 = ssub.s32 %s30, %s37
      %p269 = scmp.eq.s32.totalorder %s268, 0
      %s271 = sadd.s32 %s270, 1
      %s272 = scalar_select %p269, %s270, %s271
      %p275 = pneg %p269
      %p276 = scmp.eq.s32.totalorder %s30, 1
      %p277 = por %p275, %p276
      %p278 = scmp.ne.s32.totalorder %s270, %s273
      %p279 = scmp.eq.s32.totalorder %s30, 0
      %p280 = por %p278, %p279
      %p281 = scmp.ne.s32.totalorder %s270, %s273
      %p282 = scmp.eq.s32.totalorder %s35, 1
      %p283 = por %p281, %p282
      %p284 = scmp.ne.s32.totalorder %s273, %s274
      %p285 = scmp.eq.s32.totalorder %s35, 0
      %p286 = por %p284, %p285
      %p287 = scmp.ne.s32.totalorder %s273, %s274
      %p288 = scmp.eq.s32.totalorder %s36, 1
      %p289 = por %p287, %p288
      %p291 = scmp.ne.s32.totalorder %s274, %s290
      %p292 = scmp.eq.s32.totalorder %s36, 0
      %p293 = por %p291, %p292
      %p294 = scmp.le.s32.totalorder 1, %s30
      %p295 = scmp.lt.s32.totalorder %s30, 3
      %p296 = pnand %p294, %p295
      %p297 = pneg %p296
      // Predicated region
      $region9: #{tpu_custom_call.1} parent=5 // pred_check
        _
      $region10: #{tpu_custom_call.1} parent=5 // pred_check_branch
        %299 = sbr.rel (%p296) target = $region12
      $region11: #{tpu_custom_call.1} parent=5 // pred_region
        %s300 = ssub.s32 %s30, 1
        // Predicated region
        $region13: #{tpu_custom_call.1} parent=11 // pred_check
          %p301 = pneg %p103
        $region14: #{tpu_custom_call.1} parent=11 // pred_check_branch
          %303 = sbr.rel (%p301) target = $region16
        $region15: #{tpu_custom_call.1} parent=11 // pred_region
          _
        $region16: #{tpu_custom_call.1} parent=11 // pred_fallthru
          _
        // Predicated region
        $region17: #{tpu_custom_call.1} parent=11 // pred_check
          %p304 = pneg %p124
        $region18: #{tpu_custom_call.1} parent=11 // pred_check_branch
          %306 = sbr.rel (%p304) target = $region20
        $region19: #{tpu_custom_call.1} parent=11 // pred_region
          _
        $region20: #{tpu_custom_call.1} parent=11 // pred_fallthru
          _
        // Predicated region
        $region21: #{tpu_custom_call.1} parent=11 // pred_check
          %p307 = pneg %p145
        $region22: #{tpu_custom_call.1} parent=11 // pred_check_branch
          %309 = sbr.rel (%p307) target = $region24
        $region23: #{tpu_custom_call.1} parent=11 // pred_region
          %s311 = ssub.s32 2048, 2048
          %312 = vsyncadd [#allocation6], %s311
          %s313 = sshll.u32 [#allocation7], 4
          %s314 = int_to_ptr.vmem [resolvable:$true] %s313
          %319 = dma.hbm_to_vmem [thread:$0]  %s4, 2048, %s314, [#allocation6], 128, 128, 8
        $region24: #{tpu_custom_call.1} parent=11 // pred_fallthru
          _
        // Predicated region
        $region25: #{tpu_custom_call.1} parent=11 // pred_check
          %p320 = pneg %p166
        $region26: #{tpu_custom_call.1} parent=11 // pred_check_branch
          %322 = sbr.rel (%p320) target = $region28
        $region27: #{tpu_custom_call.1} parent=11 // pred_region
          _
        $region28: #{tpu_custom_call.1} parent=11 // pred_fallthru
          _
        // Predicated region
        $region29: #{tpu_custom_call.1} parent=11 // pred_check
          %p323 = pneg %p187
        $region30: #{tpu_custom_call.1} parent=11 // pred_check_branch
          %325 = sbr.rel (%p323) target = $region32
        $region31: #{tpu_custom_call.1} parent=11 // pred_region
          %s327 = ssub.s32 2048, 2048
          %328 = vsyncadd [#allocation9], %s327
          %s329 = sshll.u32 [#allocation8], 4
          %s330 = int_to_ptr.vmem [resolvable:$true] %s329
          %335 = dma.hbm_to_vmem [thread:$0]  %s6, 2048, %s330, [#allocation9], 128, 128, 8
        $region32: #{tpu_custom_call.1} parent=11 // pred_fallthru
          _
        // Predicated region
        $region33: #{tpu_custom_call.1} parent=11 // pred_check
          %p336 = pneg %p208
        $region34: #{tpu_custom_call.1} parent=11 // pred_check_branch
          %338 = sbr.rel (%p336) target = $region36
        $region35: #{tpu_custom_call.1} parent=11 // pred_region
          _
        $region36: #{tpu_custom_call.1} parent=11 // pred_fallthru
          _
      $region12: #{tpu_custom_call.1} parent=5 // pred_fallthru
        _
      %p339 = scmp.lt.s32.totalorder %s30, 2
      // Predicated region
      $region37: #{tpu_custom_call.1} parent=5 // pred_check
        %p340 = pneg %p339
      $region38: #{tpu_custom_call.1} parent=5 // pred_check_branch
        %342 = sbr.rel (%p340) target = $region40
      $region39: #{tpu_custom_call.1} parent=5 // pred_region
        // Predicated region
        $region41: #{tpu_custom_call.1} parent=39 // pred_check
          %p343 = pneg %p50
        $region42: #{tpu_custom_call.1} parent=39 // pred_check_branch
          %345 = sbr.rel (%p343) target = $region44
        $region43: #{tpu_custom_call.1} parent=39 // pred_region
          %s346 = sand.u32 %s40, 1
          %s347 = scalar_lea.sflag [#allocation3], %s346
          %s348 = sand.u32 %s40, 1
          %s349 = smul.addr %s348, 8
          %s350 = scalar_lea.vmem [#allocation2], %s349
          %s352 = ssub.s32 128, 128
          %353 = vsyncadd %s347, %s352
          %s354 = smul.addr %s30, 128
          %s355 = scalar_lea.hbm %s0, %s354
          %s357 = sshll.u32 %s350, 4
          %s358 = int_to_ptr.vmem [resolvable:$true] %s357
          %360 = dma.hbm_to_vmem [thread:$0]  %s355, 128, %s358, %s347
        $region44: #{tpu_custom_call.1} parent=39 // pred_fallthru
          _
        // Predicated region
        $region45: #{tpu_custom_call.1} parent=39 // pred_check
          %p361 = pneg %p76
        $region46: #{tpu_custom_call.1} parent=39 // pred_check_branch
          %363 = sbr.rel (%p361) target = $region48
        $region47: #{tpu_custom_call.1} parent=39 // pred_region
          %s364 = sand.u32 %s30, 1
          %s365 = scalar_lea.sflag [#allocation6], %s364
          %s366 = sand.u32 %s66, 1
          %s367 = smul.addr %s366, 8
          %s368 = scalar_lea.vmem [#allocation5], %s367
          %s370 = ssub.s32 128, 128
          %371 = vsyncadd %s365, %s370
          %s372 = smul.addr %s30, 128
          %s373 = scalar_lea.hbm %s1, %s372
          %s375 = sshll.u32 %s368, 4
          %s376 = int_to_ptr.vmem [resolvable:$true] %s375
          %378 = dma.hbm_to_vmem [thread:$0]  %s373, 128, %s376, %s365
        $region48: #{tpu_custom_call.1} parent=39 // pred_fallthru
          _
      $region40: #{tpu_custom_call.1} parent=5 // pred_fallthru
        _
      %p379 = scmp.le.s32.totalorder 1, %s30
      %p380 = scmp.lt.s32.totalorder %s30, 3
      %p381 = pnand %p379, %p380
      %p382 = pneg %p381
      // Predicated region
      $region49: #{tpu_custom_call.1} parent=5 // pred_check
        _
      $region50: #{tpu_custom_call.1} parent=5 // pred_check_branch
        %384 = sbr.rel (%p381) target = $region52
      $region51: #{tpu_custom_call.1} parent=5 // pred_region
        %s385 = ssub.s32 %s30, 1
        %s386 = sand.u32 %s43, 1
        %s387 = scalar_lea.sflag [#allocation3], %s386
        %s388 = sand.u32 %s43, 1
        %s389 = smul.addr %s388, 8
        %s390 = scalar_lea.vmem [#allocation2], %s389
        // Predicated region
        $region53: #{tpu_custom_call.1} parent=51 // pred_check
          %p391 = pneg %p56
        $region54: #{tpu_custom_call.1} parent=51 // pred_check_branch
          %393 = sbr.rel (%p391) target = $region56
        $region55: #{tpu_custom_call.1} parent=51 // pred_region
          %394 = dma.done %s387, 128
        $region56: #{tpu_custom_call.1} parent=51 // pred_fallthru
          _
        %s395 = sand.u32 %s35, 1
        %s396 = scalar_lea.sflag [#allocation6], %s395
        %s397 = sand.u32 %s69, 1
        %s398 = smul.addr %s397, 8
        %s399 = scalar_lea.vmem [#allocation5], %s398
        // Predicated region
        $region57: #{tpu_custom_call.1} parent=51 // pred_check
          %p400 = pneg %p82
        $region58: #{tpu_custom_call.1} parent=51 // pred_check_branch
          %402 = sbr.rel (%p400) target = $region60
        $region59: #{tpu_custom_call.1} parent=51 // pred_region
          %403 = dma.done %s396, 128
        $region60: #{tpu_custom_call.1} parent=51 // pred_fallthru
          _
        // Predicated region
        $region61: #{tpu_custom_call.1} parent=51 // pred_check
          %p404 = pneg %p145
        $region62: #{tpu_custom_call.1} parent=51 // pred_check_branch
          %406 = sbr.rel (%p404) target = $region64
        $region63: #{tpu_custom_call.1} parent=51 // pred_region
          %407 = dma.done [#allocation6], 2048
        $region64: #{tpu_custom_call.1} parent=51 // pred_fallthru
          _
        // Predicated region
        $region65: #{tpu_custom_call.1} parent=51 // pred_check
          %p408 = pneg %p187
        $region66: #{tpu_custom_call.1} parent=51 // pred_check_branch
          %410 = sbr.rel (%p408) target = $region68
        $region67: #{tpu_custom_call.1} parent=51 // pred_region
          %411 = dma.done [#allocation9], 2048
        $region68: #{tpu_custom_call.1} parent=51 // pred_fallthru
          _
        %s412 = sand.u32 %s43, 1
        %s413 = scalar_lea.sflag [#allocation3], %s412
        %s414 = sand.u32 %s43, 1
        %s415 = smul.addr %s414, 8
        %s416 = scalar_lea.vmem [#allocation2], %s415
        %p417 = pneg %p56
        %p418 = pneg %p53
        %s419 = sand.u32 %s35, 1
        %s420 = scalar_lea.sflag [#allocation6], %s419
        %s421 = sand.u32 %s69, 1
        %s422 = smul.addr %s421, 8
        %s423 = scalar_lea.vmem [#allocation5], %s422
        %p424 = pneg %p82
        %p425 = pneg %p79
        %p426 = pneg %p103
        %p427 = pneg %p100
        %p428 = pneg %p124
        %p429 = pneg %p121
        %p430 = pneg %p145
        %p431 = pneg %p142
        %p432 = pneg %p166
        %p433 = pneg %p163
        %p434 = pneg %p187
        %p435 = pneg %p184
        %p436 = pneg %p208
        %p437 = pneg %p205
        %p438 = pneg %p234
        %p439 = pneg %p231
        %s440 = sand.u32 %s221, 1
        %s441 = scalar_lea.sflag [#allocation4], %s440
        %s442 = sand.u32 %s221, 1
        %s443 = smul.addr %s442, 8
        %s444 = scalar_lea.vmem [#allocation10], %s443
        %p445 = pneg %p260
        %p446 = pneg %p257
        %s447 = sand.u32 %s35, 1
        %s448 = scalar_lea.sflag [#allocation12], %s447
        %s449 = sand.u32 %s247, 1
        %s450 = smul.addr %s449, 8
        %s451 = scalar_lea.vmem [#allocation11], %s450
        %p452 = pneg %p286
        %p453 = pneg %p283
        %s454 = sand.u32 %s35, 1
        %s455 = scalar_lea.sflag [#allocation12], %s454
        %s456 = sand.u32 %s273, 1
        %s457 = smul.addr %s456, 8
        %s458 = scalar_lea.vmem [#allocation13], %s457
        %v459 = vld [vmem:[%s390] sm:$0xff]
        %460 = vadd.xlane.f32.xlu0 %v459
        %v461 = vpop.xlane.xlu0 %460
        %v462 = vrcp.pop 128.0
        %v463 = vmul.f32 %v461, %v462
        %v464 = vsub.f32 %v459, %v463
        %v465 = vmul.f32 %v464, %v464
        %466 = vadd.xlane.f32.xlu0 %v465
        %v467 = vpop.xlane.xlu0 %466
        %v468 = vmul.f32 %v467, %v462
        %v469 = vadd.f32 %v468, 1e-05
        %v470 = vrsqrt.pop %v469
        %v471 = vmul.f32 %v464, %v470
        %v472 = vld [vmem:[%s2] sm:$0x1]
        %v474 = vlaneseq
        %v475 = vshrl.u32 %v474, 7
        %v476 = vsub.s32 0, %v475
        %v477 = vrot.slane %v472, %v476
        %v479 = vmul.f32 %v471, %v477
        %v480 = vld [vmem:[%s3] sm:$0x1]
        %v482 = vlaneseq
        %v483 = vshrl.u32 %v482, 7
        %v484 = vsub.s32 0, %v483
        %v485 = vrot.slane %v480, %v484
        %v487 = vadd.f32 %v479, %v485
        %v488 = vld [vmem:[#allocation7] sm:$0xff]
        %v489 = vld [vmem:[#allocation7 + $0x8] sm:$0xff]
        %v490 = vld [vmem:[#allocation7 + $0x10] sm:$0xff]
        %v491 = vld [vmem:[#allocation7 + $0x18] sm:$0xff]
        %v492 = vld [vmem:[#allocation7 + $0x20] sm:$0xff]
        %v493 = vld [vmem:[#allocation7 + $0x28] sm:$0xff]
        %v494 = vld [vmem:[#allocation7 + $0x30] sm:$0xff]
        %v495 = vld [vmem:[#allocation7 + $0x38] sm:$0xff]
        %v496 = vld [vmem:[#allocation7 + $0x40] sm:$0xff]
        %v497 = vld [vmem:[#allocation7 + $0x48] sm:$0xff]
        %v498 = vld [vmem:[#allocation7 + $0x50] sm:$0xff]
        %v499 = vld [vmem:[#allocation7 + $0x58] sm:$0xff]
        %v500 = vld [vmem:[#allocation7 + $0x60] sm:$0xff]
        %v501 = vld [vmem:[#allocation7 + $0x68] sm:$0xff]
        %v502 = vld [vmem:[#allocation7 + $0x70] sm:$0xff]
        %v503 = vld [vmem:[#allocation7 + $0x78] sm:$0xff]
        %v504 = vld [vmem:[%s5] sm:$0x1]
        %v506 = vlaneseq
        %v507 = vshrl.u32 %v506, 7
        %v508 = vsub.s32 0, %v507
        %v509 = vrot.slane %v504, %v508
        %511 = vmatprep.subr.mxu0 0.0
        %512 = vmatpush1.msra.mxu0 %v503
        %513 = vmatprep.subr.mxu0 0.0
        %514 = vmatpush1.msra.mxu0 %v502
        %515 = vmatprep.subr.mxu0 0.0
        %516 = vmatpush1.msra.mxu0 %v501
        %517 = vmatprep.subr.mxu0 0.0
        %518 = vmatpush1.msra.mxu0 %v500
        %519 = vmatprep.subr.mxu0 0.0
        %520 = vmatpush1.msra.mxu0 %v499
        %521 = vmatprep.subr.mxu0 0.0
        %522 = vmatpush1.msra.mxu0 %v498
        %523 = vmatprep.subr.mxu0 0.0
        %524 = vmatpush1.msra.mxu0 %v497
        %525 = vmatprep.subr.mxu0 0.0
        %526 = vmatpush1.msra.mxu0 %v496
        %527 = vmatprep.subr.mxu0 0.0
        %528 = vmatpush1.msra.mxu0 %v495
        %529 = vmatprep.subr.mxu0 0.0
        %530 = vmatpush1.msra.mxu0 %v494
        %531 = vmatprep.subr.mxu0 0.0
        %532 = vmatpush1.msra.mxu0 %v493
        %533 = vmatprep.subr.mxu0 0.0
        %534 = vmatpush1.msra.mxu0 %v492
        %535 = vmatprep.subr.mxu0 0.0
        %536 = vmatpush1.msra.mxu0 %v491
        %537 = vmatprep.subr.mxu0 0.0
        %538 = vmatpush1.msra.mxu0 %v490
        %539 = vmatprep.subr.mxu0 0.0
        %540 = vmatpush1.msra.mxu0 %v489
        %541 = vmatprep.subr.mxu0 0.0
        %542 = vmatpush1.msra.mxu0 %v488
        %543 = vmatprep.subr.mxu0 0.0
        %544 = vmatpush2.msra.mxu0 0.0
        %545 = vmatprep.subr.mxu0 0.0
        %546 = vmatpush2.msra.mxu0 0.0
        %547 = vmatprep.subr.mxu0 0.0
        %548 = vmatpush2.msra.mxu0 0.0
        %549 = vmatprep.subr.mxu0 0.0
        %550 = vmatpush2.msra.mxu0 0.0
        %551 = vmatprep.subr.mxu0 0.0
        %552 = vmatpush2.msra.mxu0 0.0
        %553 = vmatprep.subr.mxu0 0.0
        %554 = vmatpush2.msra.mxu0 0.0
        %555 = vmatprep.subr.mxu0 0.0
        %556 = vmatpush2.msra.mxu0 0.0
        %557 = vmatprep.subr.mxu0 0.0
        %558 = vmatpush2.msra.mxu0 0.0
        %559 = vmatprep.subr.mxu0 0.0
        %560 = vmatpush2.msra.mxu0 0.0
        %561 = vmatprep.subr.mxu0 0.0
        %562 = vmatpush2.msra.mxu0 0.0
        %563 = vmatprep.subr.mxu0 0.0
        %564 = vmatpush2.msra.mxu0 0.0
        %565 = vmatprep.subr.mxu0 0.0
        %566 = vmatpush2.msra.mxu0 0.0
        %567 = vmatprep.subr.mxu0 0.0
        %568 = vmatpush2.msra.mxu0 0.0
        %569 = vmatprep.subr.mxu0 0.0
        %570 = vmatpush2.msra.mxu0 0.0
        %571 = vmatprep.subr.mxu0 0.0
        %572 = vmatpush2.msra.mxu0 0.0
        %573 = vmatprep.subr.mxu0 0.0
        %574 = vmatpush2.msra.mxu0 0.0
        %575 = vmatprep.mubr.f32.mxu0 0.0
        %576 = vmatmul.mubr.f32.gmra.mxu0 %v487
        %v577 = vpop.f32.mrf.mxu0
        %v578 = vadd.f32 %v509, %v577
        %v579 = vpop.f32.mrf.mxu0
        %580 = vdwg.mxu0
        %v581 = vmax.f32 %v578, 0.0
        %v582 = vld [vmem:[#allocation8] sm:$0xff]
        %v583 = vld [vmem:[#allocation8 + $0x8] sm:$0xff]
        %v584 = vld [vmem:[#allocation8 + $0x10] sm:$0xff]
        %v585 = vld [vmem:[#allocation8 + $0x18] sm:$0xff]
        %v586 = vld [vmem:[#allocation8 + $0x20] sm:$0xff]
        %v587 = vld [vmem:[#allocation8 + $0x28] sm:$0xff]
        %v588 = vld [vmem:[#allocation8 + $0x30] sm:$0xff]
        %v589 = vld [vmem:[#allocation8 + $0x38] sm:$0xff]
        %v590 = vld [vmem:[#allocation8 + $0x40] sm:$0xff]
        %v591 = vld [vmem:[#allocation8 + $0x48] sm:$0xff]
        %v592 = vld [vmem:[#allocation8 + $0x50] sm:$0xff]
        %v593 = vld [vmem:[#allocation8 + $0x58] sm:$0xff]
        %v594 = vld [vmem:[#allocation8 + $0x60] sm:$0xff]
        %v595 = vld [vmem:[#allocation8 + $0x68] sm:$0xff]
        %v596 = vld [vmem:[#allocation8 + $0x70] sm:$0xff]
        %v597 = vld [vmem:[#allocation8 + $0x78] sm:$0xff]
        %v598 = vld [vmem:[%s7] sm:$0x1]
        %v600 = vlaneseq
        %v601 = vshrl.u32 %v600, 7
        %v602 = vsub.s32 0, %v601
        %v603 = vrot.slane %v598, %v602
        %605 = vmatprep.subr.mxu0 0.0
        %606 = vmatpush1.msra.mxu0 %v597
        %607 = vmatprep.subr.mxu0 0.0
        %608 = vmatpush1.msra.mxu0 %v596
        %609 = vmatprep.subr.mxu0 0.0
        %610 = vmatpush1.msra.mxu0 %v595
        %611 = vmatprep.subr.mxu0 0.0
        %612 = vmatpush1.msra.mxu0 %v594
        %613 = vmatprep.subr.mxu0 0.0
        %614 = vmatpush1.msra.mxu0 %v593
        %615 = vmatprep.subr.mxu0 0.0
        %616 = vmatpush1.msra.mxu0 %v592
        %617 = vmatprep.subr.mxu0 0.0
        %618 = vmatpush1.msra.mxu0 %v591
        %619 = vmatprep.subr.mxu0 0.0
        %620 = vmatpush1.msra.mxu0 %v590
        %621 = vmatprep.subr.mxu0 0.0
        %622 = vmatpush1.msra.mxu0 %v589
        %623 = vmatprep.subr.mxu0 0.0
        %624 = vmatpush1.msra.mxu0 %v588
        %625 = vmatprep.subr.mxu0 0.0
        %626 = vmatpush1.msra.mxu0 %v587
        %627 = vmatprep.subr.mxu0 0.0
        %628 = vmatpush1.msra.mxu0 %v586
        %629 = vmatprep.subr.mxu0 0.0
        %630 = vmatpush1.msra.mxu0 %v585
        %631 = vmatprep.subr.mxu0 0.0
        %632 = vmatpush1.msra.mxu0 %v584
        %633 = vmatprep.subr.mxu0 0.0
        %634 = vmatpush1.msra.mxu0 %v583
        %635 = vmatprep.subr.mxu0 0.0
        %636 = vmatpush1.msra.mxu0 %v582
        %637 = vmatprep.subr.mxu0 0.0
        %638 = vmatpush2.msra.mxu0 0.0
        %639 = vmatprep.subr.mxu0 0.0
        %640 = vmatpush2.msra.mxu0 0.0
        %641 = vmatprep.subr.mxu0 0.0
        %642 = vmatpush2.msra.mxu0 0.0
        %643 = vmatprep.subr.mxu0 0.0
        %644 = vmatpush2.msra.mxu0 0.0
        %645 = vmatprep.subr.mxu0 0.0
        %646 = vmatpush2.msra.mxu0 0.0
        %647 = vmatprep.subr.mxu0 0.0
        %648 = vmatpush2.msra.mxu0 0.0
        %649 = vmatprep.subr.mxu0 0.0
        %650 = vmatpush2.msra.mxu0 0.0
        %651 = vmatprep.subr.mxu0 0.0
        %652 = vmatpush2.msra.mxu0 0.0
        %653 = vmatprep.subr.mxu0 0.0
        %654 = vmatpush2.msra.mxu0 0.0
        %655 = vmatprep.subr.mxu0 0.0
        %656 = vmatpush2.msra.mxu0 0.0
        %657 = vmatprep.subr.mxu0 0.0
        %658 = vmatpush2.msra.mxu0 0.0
        %659 = vmatprep.subr.mxu0 0.0
        %660 = vmatpush2.msra.mxu0 0.0
        %661 = vmatprep.subr.mxu0 0.0
        %662 = vmatpush2.msra.mxu0 0.0
        %663 = vmatprep.subr.mxu0 0.0
        %664 = vmatpush2.msra.mxu0 0.0
        %665 = vmatprep.subr.mxu0 0.0
        %666 = vmatpush2.msra.mxu0 0.0
        %667 = vmatprep.subr.mxu0 0.0
        %668 = vmatpush2.msra.mxu0 0.0
        %669 = vmatprep.mubr.f32.mxu0 0.0
        %670 = vmatmul.mubr.f32.gmra.mxu0 %v581
        %v671 = vpop.f32.mrf.mxu0
        %v672 = vadd.f32 %v603, %v671
        %v673 = vpop.f32.mrf.mxu0
        %674 = vdwg.mxu0
        %v675 = vld [vmem:[%s399] sm:$0xff]
        %v676 = vadd.f32 %v672, %v675
        %677 = vst [vmem:[%s444] sm:$0xff] %v676
        %678 = vst [vmem:[%s451] sm:$0xff] %v581
        %679 = vst [vmem:[%s458] sm:$0xff] %v672
        %s680 = sand.u32 %s221, 1
        %s681 = scalar_lea.sflag [#allocation4], %s680
        %s682 = sand.u32 %s221, 1
        %s683 = smul.addr %s682, 8
        %s684 = scalar_lea.vmem [#allocation10], %s683
        %s685 = sand.u32 %s35, 1
        %s686 = scalar_lea.sflag [#allocation12], %s685
        %s687 = sand.u32 %s247, 1
        %s688 = smul.addr %s687, 8
        %s689 = scalar_lea.vmem [#allocation11], %s688
        %s690 = sand.u32 %s35, 1
        %s691 = scalar_lea.sflag [#allocation12], %s690
        %s692 = sand.u32 %s273, 1
        %s693 = smul.addr %s692, 8
        %s694 = scalar_lea.vmem [#allocation13], %s693
        // Predicated region
        $region69: #{tpu_custom_call.1} parent=51 // pred_check
          %p695 = pneg %p231
        $region70: #{tpu_custom_call.1} parent=51 // pred_check_branch
          %697 = sbr.rel (%p695) target = $region72
        $region71: #{tpu_custom_call.1} parent=51 // pred_region
          %s699 = ssub.s32 128, 128
          %700 = vsyncadd %s681, %s699
          %s701 = smul.addr %s35, 128
          %s702 = scalar_lea.hbm %s8, %s701
          %s704 = sshll.u32 %s684, 4
          %s705 = int_to_ptr.vmem [resolvable:$true] %s704
          %707 = dma.vmem_to_hbm [thread:$0]  %s705, 128, %s702, %s681
        $region72: #{tpu_custom_call.1} parent=51 // pred_fallthru
          _
        // Predicated region
        $region73: #{tpu_custom_call.1} parent=51 // pred_check
          %p708 = pneg %p257
        $region74: #{tpu_custom_call.1} parent=51 // pred_check_branch
          %710 = sbr.rel (%p708) target = $region76
        $region75: #{tpu_custom_call.1} parent=51 // pred_region
          %s712 = ssub.s32 128, 128
          %713 = vsyncadd %s686, %s712
          %s714 = smul.addr %s35, 128
          %s715 = scalar_lea.hbm %s9, %s714
          %s717 = sshll.u32 %s689, 4
          %s718 = int_to_ptr.vmem [resolvable:$true] %s717
          %720 = dma.vmem_to_hbm [thread:$0]  %s718, 128, %s715, %s686
        $region76: #{tpu_custom_call.1} parent=51 // pred_fallthru
          _
        // Predicated region
        $region77: #{tpu_custom_call.1} parent=51 // pred_check
          %p721 = pneg %p283
        $region78: #{tpu_custom_call.1} parent=51 // pred_check_branch
          %723 = sbr.rel (%p721) target = $region80
        $region79: #{tpu_custom_call.1} parent=51 // pred_region
          %s725 = ssub.s32 128, 128
          %726 = vsyncadd %s691, %s725
          %s727 = smul.addr %s35, 128
          %s728 = scalar_lea.hbm %s10, %s727
          %s730 = sshll.u32 %s694, 4
          %s731 = int_to_ptr.vmem [resolvable:$true] %s730
          %733 = dma.vmem_to_hbm [thread:$0]  %s731, 128, %s728, %s691
        $region80: #{tpu_custom_call.1} parent=51 // pred_fallthru
          _
      $region52: #{tpu_custom_call.1} parent=5 // pred_fallthru
        _
      %p734 = scmp.le.s32.totalorder 2, %s30
      // Predicated region
      $region81: #{tpu_custom_call.1} parent=5 // pred_check
        %p735 = pneg %p734
      $region82: #{tpu_custom_call.1} parent=5 // pred_check_branch
        %737 = sbr.rel (%p735) target = $region84
      $region83: #{tpu_custom_call.1} parent=5 // pred_region
        %s738 = ssub.s32 %s30, 2
        // Predicated region
        $region85: #{tpu_custom_call.1} parent=83 // pred_check
          %p739 = pneg %p237
        $region86: #{tpu_custom_call.1} parent=83 // pred_check_branch
          %741 = sbr.rel (%p739) target = $region88
        $region87: #{tpu_custom_call.1} parent=83 // pred_region
          %s742 = sand.u32 %s222, 1
          %s743 = scalar_lea.sflag [#allocation4], %s742
          %s744 = sand.u32 %s222, 1
          %s745 = smul.addr %s744, 8
          %s746 = scalar_lea.vmem [#allocation10], %s745
          %747 = dma.done %s743, 128
        $region88: #{tpu_custom_call.1} parent=83 // pred_fallthru
          _
        // Predicated region
        $region89: #{tpu_custom_call.1} parent=83 // pred_check
          %p748 = pneg %p263
        $region90: #{tpu_custom_call.1} parent=83 // pred_check_branch
          %750 = sbr.rel (%p748) target = $region92
        $region91: #{tpu_custom_call.1} parent=83 // pred_region
          %s751 = sand.u32 %s36, 1
          %s752 = scalar_lea.sflag [#allocation12], %s751
          %s753 = sand.u32 %s248, 1
          %s754 = smul.addr %s753, 8
          %s755 = scalar_lea.vmem [#allocation11], %s754
          %756 = dma.done %s752, 128
        $region92: #{tpu_custom_call.1} parent=83 // pred_fallthru
          _
        // Predicated region
        $region93: #{tpu_custom_call.1} parent=83 // pred_check
          %p757 = pneg %p289
        $region94: #{tpu_custom_call.1} parent=83 // pred_check_branch
          %759 = sbr.rel (%p757) target = $region96
        $region95: #{tpu_custom_call.1} parent=83 // pred_region
          %s760 = sand.u32 %s36, 1
          %s761 = scalar_lea.sflag [#allocation12], %s760
          %s762 = sand.u32 %s274, 1
          %s763 = smul.addr %s762, 8
          %s764 = scalar_lea.vmem [#allocation13], %s763
          %765 = dma.done %s761, 128
        $region96: #{tpu_custom_call.1} parent=83 // pred_fallthru
          _
      $region84: #{tpu_custom_call.1} parent=5 // pred_fallthru
        _
    $region6: #{tpu_custom_call.1} parent=1 // loop_footer
      %s34 = sadd.s32 1, %s30
    $region7: #{tpu_custom_call.1} parent=1 // loop_footer_branch
      %29 = sbr.rel target = $region3
    $region8: #{tpu_custom_call.1} parent=1 // loop_exit
      _
    %766 = vsyncpa [#allocation3], 1
    %s767 = scalar_lea.sflag [#allocation3], 1
    %768 = vsyncpa %s767, 1
    %769 = vsyncpa [#allocation6], 1
    %s770 = scalar_lea.sflag [#allocation6], 1
    %771 = vsyncpa %s770, 1
    %772 = vsyncpa [#allocation9], 1
    %773 = vsyncpa [#allocation4], 1
    %s774 = scalar_lea.sflag [#allocation4], 1
    %775 = vsyncpa %s774, 1
    %776 = vsyncpa [#allocation12], 1
    %s777 = scalar_lea.sflag [#allocation12], 1
    %778 = vsyncpa %s777, 1

</llo_original>
